<compile_context>
chip_gen: v7x
topology: tpu7x:2x2x1
jax: 0.10.0
libtpu: 0.0.40
codegen_flags: <defaults>
</compile_context>

<pallas_src>
import jax
import jax.numpy as jnp
import numpy as np
from jax.experimental import pallas as pl
from jax.experimental.pallas import tpu as pltpu


def lstm_chunk_kernel(gx_ref, whh_ref, wfc_ref, bfc_ref, out_ref, h_ref, c_ref):
    """One (batch-tile, time-chunk) grid point of the reverse-direction LSTM.

    gx_ref : (C, BT, 4*Hp)  gate pre-activations x@W_ih^T + b for this chunk,
                            time already reversed & time-major (f32)
    whh_ref: (Hp, 4*Hp)     recurrent weights, pre-transposed, bf16,
                            gate blocks [i | f | g | o], each Hp columns
    wfc_ref: (Hp, Op)       classifier weights, pre-transposed (f32)
    bfc_ref: (1, Op)        classifier bias (-1e30 in padded lanes, f32)
    out_ref: (BT, Op)       softmax probabilities (lane-dense slab)
    h_ref  : (BT, Hp)       VMEM scratch: hidden state carried across chunks
    c_ref  : (BT, Hp)       VMEM scratch: cell state carried across chunks
    """
    it = pl.program_id(1)                 # time-chunk index (sequential axis)
    C = gx_ref.shape[0]                   # steps in this chunk (static)
    Hp = whh_ref.shape[0]

    @pl.when(it == 0)
    def _init():
        h_ref[...] = jnp.zeros_like(h_ref)
        c_ref[...] = jnp.zeros_like(c_ref)

    # Loop-invariant recurrent weights: read ONCE per chunk (hoisted out of the
    # step body), stored bf16 to halve the per-step weight stream.
    whh = whh_ref[...]                    # (Hp, 4*Hp) bf16

    def step(t, carry):
        h, c = carry
        gates = gx_ref[t] + jnp.dot(h.astype(jnp.bfloat16), whh,
                                    preferred_element_type=jnp.float32)  # (BT, 4Hp)
        # Hp is a multiple of 128 -> each gate slice is a lane-aligned vreg view.
        i_g = jax.nn.sigmoid(gates[:, 0 * Hp:1 * Hp])
        f_g = jax.nn.sigmoid(gates[:, 1 * Hp:2 * Hp])
        g_g = jnp.tanh(gates[:, 2 * Hp:3 * Hp])
        o_g = jax.nn.sigmoid(gates[:, 3 * Hp:4 * Hp])
        c_new = f_g * c + i_g * g_g
        h_new = o_g * jnp.tanh(c_new)
        return h_new, c_new

    # Bounded unroll: keeps LLO-scheduler visibility without program blowup.
    h, c = jax.lax.fori_loop(0, C, step, (h_ref[...], c_ref[...]),
                             unroll=min(8, C))
    h_ref[...] = h
    c_ref[...] = c

    @pl.when(it == pl.num_programs(1) - 1)
    def _finalize():
        # Classifier + numerically stable softmax in f32.  Padded logit lanes
        # carry a -1e30 bias so they contribute exactly 0 after exp.
        logits = (jnp.dot(h, wfc_ref[...], preferred_element_type=jnp.float32)
                  + bfc_ref[...])
        m = jnp.max(logits, axis=-1, keepdims=True)
        e = jnp.exp(logits - m)
        s = jnp.sum(e, axis=-1, keepdims=True)
        inv = pl.reciprocal(s, approx=True)   # EUP slot (nearly free)
        inv = inv * (2.0 - s * inv)           # one Newton step -> f32 accuracy
        out_ref[...] = e * inv


def _round_up(x, m):
    return (x + m - 1) // m * m


@jax.jit
def text_lstm_forward(tokens, emb_table, w_ih, w_hh, b_ih, b_hh, w_fc, b_fc):
    bs, seq = tokens.shape
    E = emb_table.shape[1]
    H = w_hh.shape[1]
    O = w_fc.shape[0]

    LANE, SUB = 128, 8
    Hp = _round_up(H, LANE)      # lane-aligned gate slices
    Op = _round_up(O, LANE)      # lane-dense output store
    bs_p = _round_up(bs, SUB)    # sublane-aligned batch

    BT = SUB                     # batch tile per grid point (>=8 sublanes)
    NB = bs_p // BT              # batch-parallel grid extent (2nd TC on v7x)
    CHUNK = 64                   # time steps per streamed chunk
    C = min(seq, CHUNK)
    seq_p = _round_up(seq, C)    # pad steps are processed FIRST (see below)
    NT = seq_p // C

    f32 = jnp.float32

    # --- weight prep (once, under jit).  Zero padding keeps padded hidden
    #     units exactly 0 through the recurrence (gate pre-act 0 -> c,h stay 0),
    #     so real lanes are numerically untouched. ----------------------------
    wih_p = jnp.zeros((4, Hp, E), f32).at[:, :H, :].set(
        w_ih.astype(f32).reshape(4, H, E))
    whh_p = jnp.zeros((4, Hp, Hp), f32).at[:, :H, :H].set(
        w_hh.astype(f32).reshape(4, H, H))
    b_p = jnp.zeros((4, Hp), f32).at[:, :H].set(
        (b_ih + b_hh).astype(f32).reshape(4, H))

    wih_t = wih_p.reshape(4 * Hp, E).T                       # (E, 4Hp) f32
    whh_t = whh_p.reshape(4 * Hp, Hp).T.astype(jnp.bfloat16)  # (Hp, 4Hp) bf16
    bias = b_p.reshape(1, 4 * Hp)

    wfc_t = jnp.zeros((Hp, Op), f32).at[:H, :O].set(w_fc.astype(f32).T)
    bfc = jnp.full((1, Op), -1e30, f32).at[0, :O].set(b_fc.astype(f32))

    # --- small-vocab gate table: G[v] = emb[v] @ W_ih^T + b.  Replaces the big
    #     per-token input matmul + x2d materialization + gx VMEM scratch. -----
    G = jnp.dot(emb_table.astype(f32), wih_t,
                precision=jax.lax.Precision.HIGHEST) + bias   # (VOCAB, 4Hp)

    # --- gather gate pre-activations straight into reversed time-major layout.
    #     Zero rows prepended for time padding are provable no-ops: with
    #     h=c=0 entering them, gates=0 -> g=tanh(0)=0 -> c,h stay 0.
    tokens_p = jnp.zeros((bs_p, seq), tokens.dtype).at[:bs, :].set(tokens)
    tok_rev_tm = tokens_p.T[::-1]                             # (seq, bs_p)
    gx = jnp.take(G, tok_rev_tm, axis=0)                      # (seq, bs_p, 4Hp)
    gx = jnp.zeros((seq_p, bs_p, 4 * Hp), f32).at[seq_p - seq:, :, :].set(gx)

    # --- explicit VMEM budget: double-buffered gx chunk + resident weights. --
    gx_blk = C * BT * 4 * Hp * 4
    resident = (Hp * 4 * Hp * 2        # whh bf16
                + Hp * Op * 4 + Op * 4  # wfc + bfc
                + BT * Op * 4           # out block
                + 2 * BT * Hp * 4)      # h/c scratch
    vmem_limit = int(min(max(2 * gx_blk + 2 * resident + (4 << 20), 32 << 20),
                         64 << 20))

    out_padded = pl.pallas_call(
        lstm_chunk_kernel,
        out_shape=jax.ShapeDtypeStruct((bs_p, Op), f32),
        grid=(NB, NT),
        in_specs=[
            pl.BlockSpec((C, BT, 4 * Hp), lambda ib, it: (it, ib, 0)),
            pl.BlockSpec((Hp, 4 * Hp), lambda ib, it: (0, 0)),
            pl.BlockSpec((Hp, Op), lambda ib, it: (0, 0)),
            pl.BlockSpec((1, Op), lambda ib, it: (0, 0)),
        ],
        out_specs=pl.BlockSpec((BT, Op), lambda ib, it: (ib, 0)),
        scratch_shapes=[pltpu.VMEM((BT, Hp), f32),   # h carry
                        pltpu.VMEM((BT, Hp), f32)],  # c carry
        compiler_params=pltpu.CompilerParams(
            dimension_semantics=("parallel", "arbitrary"),
            vmem_limit_bytes=vmem_limit),
    )(gx, whh_t, wfc_t, bfc)

    return out_padded[:bs, :O]


def _reference(tokens, emb_table, w_ih, w_hh, b_ih, b_hh, w_fc, b_fc):
    """Pure-JAX reference of the same forward pass (reverse-direction LSTM)."""
    bs = tokens.shape[0]
    H = w_hh.shape[1]
    vec = jnp.take(emb_table, tokens, axis=0)
    vec = jnp.transpose(vec, (1, 0, 2))[::-1]      # (seq, bs, E) reversed

    def step(carry, x_t):
        h, c = carry
        gates = x_t @ w_ih.T + h @ w_hh.T + b_ih + b_hh
        i_g, f_g, g_g, o_g = jnp.split(gates, 4, axis=-1)
        c = jax.nn.sigmoid(f_g) * c + jax.nn.sigmoid(i_g) * jnp.tanh(g_g)
        h = jax.nn.sigmoid(o_g) * jnp.tanh(c)
        return (h, c), None

    (h, _), _ = jax.lax.scan(step,
                             (jnp.zeros((bs, H)), jnp.zeros((bs, H))), vec)
    logits = h @ w_fc.T + b_fc
    return jax.nn.softmax(logits, axis=-1)


if __name__ == "__main__":
    VOCAB, E, H, O = 50, 16, 32, 4
    bs, seq = 2, 8

    key = jax.random.PRNGKey(0)
    ks = jax.random.split(key, 8)
    emb_table = jax.random.normal(ks[0], (VOCAB, E), jnp.float32)
    w_ih = 0.1 * jax.random.normal(ks[1], (4 * H, E), jnp.float32)
    w_hh = 0.1 * jax.random.normal(ks[2], (4 * H, H), jnp.float32)
    b_ih = 0.1 * jax.random.normal(ks[3], (4 * H,), jnp.float32)
    b_hh = 0.1 * jax.random.normal(ks[4], (4 * H,), jnp.float32)
    w_fc = 0.1 * jax.random.normal(ks[5], (O, H), jnp.float32)
    b_fc = 0.1 * jax.random.normal(ks[6], (O,), jnp.float32)
    tokens = jax.random.randint(ks[7], (bs, seq), 0, VOCAB, dtype=jnp.int32)

    out = text_lstm_forward(tokens, emb_table, w_ih, w_hh,
                            b_ih, b_hh, w_fc, b_fc)
    jax.block_until_ready(out)

    ref = _reference(tokens, emb_table, w_ih, w_hh, b_ih, b_hh, w_fc, b_fc)
    # Tolerance relaxed vs. pure-f32 because the recurrent W_hh / h matmul runs
    # in bf16 (f32 accumulate) per the performance review; logits/softmax are f32.
    np.testing.assert_allclose(np.asarray(out), np.asarray(ref),
                               rtol=2e-2, atol=2e-3)
    print("KERNEL_OK")
</pallas_src>

<mosaic_0001>
module attributes {stable_mosaic.version = 11 : i64} {
  func.func @lstm_chunk_kernel(%arg0: i32, %arg1: i32, %arg2: memref<8x8x512xf32, #tpu.memory_space<vmem>>, %arg3: memref<128x512xbf16, #tpu.memory_space<vmem>>, %arg4: memref<128x128xf32, #tpu.memory_space<vmem>>, %arg5: memref<1x128xf32, #tpu.memory_space<vmem>>, %arg6: memref<8x128xf32, #tpu.memory_space<vmem>>, %arg7: memref<8x128xf32, #tpu.memory_space<vmem>>, %arg8: memref<8x128xf32, #tpu.memory_space<vmem>>) attributes {dimension_semantics = [#tpu.dimension_semantics<parallel>, #tpu.dimension_semantics<arbitrary>], iteration_bounds = array<i64: 1, 1>, scalar_prefetch = 0 : i64, scratch_operands = 2 : i64, tpu.core_type = #tpu.core_type<tc>, window_params = [{transform_indices = @transform_0, window_bounds = array<i64: 8, 8, 512>}, {pipeline_mode = #tpu.pipeline_mode<synchronous>, transform_indices = @transform_1, window_bounds = array<i64: 128, 512>}, {pipeline_mode = #tpu.pipeline_mode<synchronous>, transform_indices = @transform_2, window_bounds = array<i64: 128, 128>}, {pipeline_mode = #tpu.pipeline_mode<synchronous>, transform_indices = @transform_3, window_bounds = array<i64: 1, 128>}, {transform_indices = @transform_4, window_bounds = array<i64: 8, 128>}]} {
    %c0_i32 = arith.constant 0 : i32
    %0 = arith.cmpi eq, %arg1, %c0_i32 : i32
    %1 = arith.extui %0 : i1 to i32
    %c0_i32_0 = arith.constant 0 : i32
    %2 = arith.cmpi ne, %1, %c0_i32_0 : i32
    scf.if %2 {
      %cst_60 = arith.constant 0.000000e+00 : f32
      %259 = vector.broadcast %cst_60 : f32 to vector<8x128xf32>
      %c0_61 = arith.constant 0 : index
      %c0_62 = arith.constant 0 : index
      %260 = vector.load %arg7[%c0_61, %c0_62] : memref<8x128xf32, #tpu.memory_space<vmem>>, vector<8x128xf32>
      tpu.vector_store %arg7[%c0_61, %c0_62], %259 {strides = array<i32>} : memref<8x128xf32, #tpu.memory_space<vmem>>, vector<8x128xf32>,
      %cst_63 = arith.constant 0.000000e+00 : f32
      %261 = vector.broadcast %cst_63 : f32 to vector<8x128xf32>
      %c0_64 = arith.constant 0 : index
      %c0_65 = arith.constant 0 : index
      %262 = vector.load %arg8[%c0_64, %c0_65] : memref<8x128xf32, #tpu.memory_space<vmem>>, vector<8x128xf32>
      tpu.vector_store %arg8[%c0_64, %c0_65], %261 {strides = array<i32>} : memref<8x128xf32, #tpu.memory_space<vmem>>, vector<8x128xf32>,
    } else {
    }
    %c0 = arith.constant 0 : index
    %c0_1 = arith.constant 0 : index
    %3 = vector.load %arg3[%c0, %c0_1] : memref<128x512xbf16, #tpu.memory_space<vmem>>, vector<128x512xbf16>
    %c0_2 = arith.constant 0 : index
    %c0_3 = arith.constant 0 : index
    %4 = vector.load %arg7[%c0_2, %c0_3] : memref<8x128xf32, #tpu.memory_space<vmem>>, vector<8x128xf32>
    %c0_4 = arith.constant 0 : index
    %c0_5 = arith.constant 0 : index
    %5 = vector.load %arg8[%c0_4, %c0_5] : memref<8x128xf32, #tpu.memory_space<vmem>>, vector<8x128xf32>
    %c0_i32_6 = arith.constant 0 : i32
    %6 = arith.index_cast %c0_i32_6 : i32 to index
    %c0_7 = arith.constant 0 : index
    %c0_8 = arith.constant 0 : index
    %7 = vector.load %arg2[%6, %c0_7, %c0_8] : memref<8x8x512xf32, #tpu.memory_space<vmem>>, vector<1x8x512xf32>
    %8 = vector.shape_cast %7 : vector<1x8x512xf32> to vector<8x512xf32>
    %9 = arith.truncf %4 : vector<8x128xf32> to vector<8x128xbf16>
    %cst = arith.constant dense<0.000000e+00> : vector<8x512xf32>
    %10 = tpu.matmul %9, %3, %cst {dimension_numbers = #tpu.dot_dimension_numbers<[1], [0], [0], [1], [0, 0, 1, 1], [], []>} : vector<8x128xbf16>, vector<128x512xbf16>, vector<8x512xf32> -> vector<8x512xf32>
    %11 = arith.addf %8, %10 : vector<8x512xf32>
    %12 = vector.extract_strided_slice %11 {offsets = [0, 0], sizes = [8, 128], strides = [1, 1]} : vector<8x512xf32> to vector<8x128xf32>
    %13 = arith.negf %12 : vector<8x128xf32>
    %14 = math.exp %13 : vector<8x128xf32>
    %cst_9 = arith.constant 1.000000e+00 : f32
    %15 = vector.broadcast %cst_9 : f32 to vector<8x128xf32>
    %16 = arith.addf %15, %14 : vector<8x128xf32>
    %17 = arith.divf %15, %16 : vector<8x128xf32>
    %18 = vector.extract_strided_slice %11 {offsets = [0, 128], sizes = [8, 128], strides = [1, 1]} : vector<8x512xf32> to vector<8x128xf32>
    %19 = arith.negf %18 : vector<8x128xf32>
    %20 = math.exp %19 : vector<8x128xf32>
    %cst_10 = arith.constant 1.000000e+00 : f32
    %21 = vector.broadcast %cst_10 : f32 to vector<8x128xf32>
    %22 = arith.addf %21, %20 : vector<8x128xf32>
    %23 = arith.divf %21, %22 : vector<8x128xf32>
    %24 = vector.extract_strided_slice %11 {offsets = [0, 256], sizes = [8, 128], strides = [1, 1]} : vector<8x512xf32> to vector<8x128xf32>
    %25 = math.tanh %24 : vector<8x128xf32>
    %26 = vector.extract_strided_slice %11 {offsets = [0, 384], sizes = [8, 128], strides = [1, 1]} : vector<8x512xf32> to vector<8x128xf32>
    %27 = arith.negf %26 : vector<8x128xf32>
    %28 = math.exp %27 : vector<8x128xf32>
    %cst_11 = arith.constant 1.000000e+00 : f32
    %29 = vector.broadcast %cst_11 : f32 to vector<8x128xf32>
    %30 = arith.addf %29, %28 : vector<8x128xf32>
    %31 = arith.divf %29, %30 : vector<8x128xf32>
    %32 = arith.mulf %23, %5 : vector<8x128xf32>
    %33 = arith.mulf %17, %25 : vector<8x128xf32>
    %34 = arith.addf %32, %33 : vector<8x128xf32>
    %35 = math.tanh %34 : vector<8x128xf32>
    %36 = arith.mulf %31, %35 : vector<8x128xf32>
    %c1_i32 = arith.constant 1 : i32
    %37 = arith.index_cast %c1_i32 : i32 to index
    %c0_12 = arith.constant 0 : index
    %c0_13 = arith.constant 0 : index
    %38 = vector.load %arg2[%37, %c0_12, %c0_13] : memref<8x8x512xf32, #tpu.memory_space<vmem>>, vector<1x8x512xf32>
    %39 = vector.shape_cast %38 : vector<1x8x512xf32> to vector<8x512xf32>
    %40 = arith.truncf %36 : vector<8x128xf32> to vector<8x128xbf16>
    %cst_14 = arith.constant dense<0.000000e+00> : vector<8x512xf32>
    %41 = tpu.matmul %40, %3, %cst_14 {dimension_numbers = #tpu.dot_dimension_numbers<[1], [0], [0], [1], [0, 0, 1, 1], [], []>} : vector<8x128xbf16>, vector<128x512xbf16>, vector<8x512xf32> -> vector<8x512xf32>
    %42 = arith.addf %39, %41 : vector<8x512xf32>
    %43 = vector.extract_strided_slice %42 {offsets = [0, 0], sizes = [8, 128], strides = [1, 1]} : vector<8x512xf32> to vector<8x128xf32>
    %44 = arith.negf %43 : vector<8x128xf32>
    %45 = math.exp %44 : vector<8x128xf32>
    %cst_15 = arith.constant 1.000000e+00 : f32
    %46 = vector.broadcast %cst_15 : f32 to vector<8x128xf32>
    %47 = arith.addf %46, %45 : vector<8x128xf32>
    %48 = arith.divf %46, %47 : vector<8x128xf32>
    %49 = vector.extract_strided_slice %42 {offsets = [0, 128], sizes = [8, 128], strides = [1, 1]} : vector<8x512xf32> to vector<8x128xf32>
    %50 = arith.negf %49 : vector<8x128xf32>
    %51 = math.exp %50 : vector<8x128xf32>
    %cst_16 = arith.constant 1.000000e+00 : f32
    %52 = vector.broadcast %cst_16 : f32 to vector<8x128xf32>
    %53 = arith.addf %52, %51 : vector<8x128xf32>
    %54 = arith.divf %52, %53 : vector<8x128xf32>
    %55 = vector.extract_strided_slice %42 {offsets = [0, 256], sizes = [8, 128], strides = [1, 1]} : vector<8x512xf32> to vector<8x128xf32>
    %56 = math.tanh %55 : vector<8x128xf32>
    %57 = vector.extract_strided_slice %42 {offsets = [0, 384], sizes = [8, 128], strides = [1, 1]} : vector<8x512xf32> to vector<8x128xf32>
    %58 = arith.negf %57 : vector<8x128xf32>
    %59 = math.exp %58 : vector<8x128xf32>
    %cst_17 = arith.constant 1.000000e+00 : f32
    %60 = vector.broadcast %cst_17 : f32 to vector<8x128xf32>
    %61 = arith.addf %60, %59 : vector<8x128xf32>
    %62 = arith.divf %60, %61 : vector<8x128xf32>
    %63 = arith.mulf %54, %34 : vector<8x128xf32>
    %64 = arith.mulf %48, %56 : vector<8x128xf32>
    %65 = arith.addf %63, %64 : vector<8x128xf32>
    %66 = math.tanh %65 : vector<8x128xf32>
    %67 = arith.mulf %62, %66 : vector<8x128xf32>
    %c2_i32 = arith.constant 2 : i32
    %68 = arith.index_cast %c2_i32 : i32 to index
    %c0_18 = arith.constant 0 : index
    %c0_19 = arith.constant 0 : index
    %69 = vector.load %arg2[%68, %c0_18, %c0_19] : memref<8x8x512xf32, #tpu.memory_space<vmem>>, vector<1x8x512xf32>
    %70 = vector.shape_cast %69 : vector<1x8x512xf32> to vector<8x512xf32>
    %71 = arith.truncf %67 : vector<8x128xf32> to vector<8x128xbf16>
    %cst_20 = arith.constant dense<0.000000e+00> : vector<8x512xf32>
    %72 = tpu.matmul %71, %3, %cst_20 {dimension_numbers = #tpu.dot_dimension_numbers<[1], [0], [0], [1], [0, 0, 1, 1], [], []>} : vector<8x128xbf16>, vector<128x512xbf16>, vector<8x512xf32> -> vector<8x512xf32>
    %73 = arith.addf %70, %72 : vector<8x512xf32>
    %74 = vector.extract_strided_slice %73 {offsets = [0, 0], sizes = [8, 128], strides = [1, 1]} : vector<8x512xf32> to vector<8x128xf32>
    %75 = arith.negf %74 : vector<8x128xf32>
    %76 = math.exp %75 : vector<8x128xf32>
    %cst_21 = arith.constant 1.000000e+00 : f32
    %77 = vector.broadcast %cst_21 : f32 to vector<8x128xf32>
    %78 = arith.addf %77, %76 : vector<8x128xf32>
    %79 = arith.divf %77, %78 : vector<8x128xf32>
    %80 = vector.extract_strided_slice %73 {offsets = [0, 128], sizes = [8, 128], strides = [1, 1]} : vector<8x512xf32> to vector<8x128xf32>
    %81 = arith.negf %80 : vector<8x128xf32>
    %82 = math.exp %81 : vector<8x128xf32>
    %cst_22 = arith.constant 1.000000e+00 : f32
    %83 = vector.broadcast %cst_22 : f32 to vector<8x128xf32>
    %84 = arith.addf %83, %82 : vector<8x128xf32>
    %85 = arith.divf %83, %84 : vector<8x128xf32>
    %86 = vector.extract_strided_slice %73 {offsets = [0, 256], sizes = [8, 128], strides = [1, 1]} : vector<8x512xf32> to vector<8x128xf32>
    %87 = math.tanh %86 : vector<8x128xf32>
    %88 = vector.extract_strided_slice %73 {offsets = [0, 384], sizes = [8, 128], strides = [1, 1]} : vector<8x512xf32> to vector<8x128xf32>
    %89 = arith.negf %88 : vector<8x128xf32>
    %90 = math.exp %89 : vector<8x128xf32>
    %cst_23 = arith.constant 1.000000e+00 : f32
    %91 = vector.broadcast %cst_23 : f32 to vector<8x128xf32>
    %92 = arith.addf %91, %90 : vector<8x128xf32>
    %93 = arith.divf %91, %92 : vector<8x128xf32>
    %94 = arith.mulf %85, %65 : vector<8x128xf32>
    %95 = arith.mulf %79, %87 : vector<8x128xf32>
    %96 = arith.addf %94, %95 : vector<8x128xf32>
    %97 = math.tanh %96 : vector<8x128xf32>
    %98 = arith.mulf %93, %97 : vector<8x128xf32>
    %c3_i32 = arith.constant 3 : i32
    %99 = arith.index_cast %c3_i32 : i32 to index
    %c0_24 = arith.constant 0 : index
    %c0_25 = arith.constant 0 : index
    %100 = vector.load %arg2[%99, %c0_24, %c0_25] : memref<8x8x512xf32, #tpu.memory_space<vmem>>, vector<1x8x512xf32>
    %101 = vector.shape_cast %100 : vector<1x8x512xf32> to vector<8x512xf32>
    %102 = arith.truncf %98 : vector<8x128xf32> to vector<8x128xbf16>
    %cst_26 = arith.constant dense<0.000000e+00> : vector<8x512xf32>
    %103 = tpu.matmul %102, %3, %cst_26 {dimension_numbers = #tpu.dot_dimension_numbers<[1], [0], [0], [1], [0, 0, 1, 1], [], []>} : vector<8x128xbf16>, vector<128x512xbf16>, vector<8x512xf32> -> vector<8x512xf32>
    %104 = arith.addf %101, %103 : vector<8x512xf32>
    %105 = vector.extract_strided_slice %104 {offsets = [0, 0], sizes = [8, 128], strides = [1, 1]} : vector<8x512xf32> to vector<8x128xf32>
    %106 = arith.negf %105 : vector<8x128xf32>
    %107 = math.exp %106 : vector<8x128xf32>
    %cst_27 = arith.constant 1.000000e+00 : f32
    %108 = vector.broadcast %cst_27 : f32 to vector<8x128xf32>
    %109 = arith.addf %108, %107 : vector<8x128xf32>
    %110 = arith.divf %108, %109 : vector<8x128xf32>
    %111 = vector.extract_strided_slice %104 {offsets = [0, 128], sizes = [8, 128], strides = [1, 1]} : vector<8x512xf32> to vector<8x128xf32>
    %112 = arith.negf %111 : vector<8x128xf32>
    %113 = math.exp %112 : vector<8x128xf32>
    %cst_28 = arith.constant 1.000000e+00 : f32
    %114 = vector.broadcast %cst_28 : f32 to vector<8x128xf32>
    %115 = arith.addf %114, %113 : vector<8x128xf32>
    %116 = arith.divf %114, %115 : vector<8x128xf32>
    %117 = vector.extract_strided_slice %104 {offsets = [0, 256], sizes = [8, 128], strides = [1, 1]} : vector<8x512xf32> to vector<8x128xf32>
    %118 = math.tanh %117 : vector<8x128xf32>
    %119 = vector.extract_strided_slice %104 {offsets = [0, 384], sizes = [8, 128], strides = [1, 1]} : vector<8x512xf32> to vector<8x128xf32>
    %120 = arith.negf %119 : vector<8x128xf32>
    %121 = math.exp %120 : vector<8x128xf32>
    %cst_29 = arith.constant 1.000000e+00 : f32
    %122 = vector.broadcast %cst_29 : f32 to vector<8x128xf32>
    %123 = arith.addf %122, %121 : vector<8x128xf32>
    %124 = arith.divf %122, %123 : vector<8x128xf32>
    %125 = arith.mulf %116, %96 : vector<8x128xf32>
    %126 = arith.mulf %110, %118 : vector<8x128xf32>
    %127 = arith.addf %125, %126 : vector<8x128xf32>
    %128 = math.tanh %127 : vector<8x128xf32>
    %129 = arith.mulf %124, %128 : vector<8x128xf32>
    %c4_i32 = arith.constant 4 : i32
    %130 = arith.index_cast %c4_i32 : i32 to index
    %c0_30 = arith.constant 0 : index
    %c0_31 = arith.constant 0 : index
    %131 = vector.load %arg2[%130, %c0_30, %c0_31] : memref<8x8x512xf32, #tpu.memory_space<vmem>>, vector<1x8x512xf32>
    %132 = vector.shape_cast %131 : vector<1x8x512xf32> to vector<8x512xf32>
    %133 = arith.truncf %129 : vector<8x128xf32> to vector<8x128xbf16>
    %cst_32 = arith.constant dense<0.000000e+00> : vector<8x512xf32>
    %134 = tpu.matmul %133, %3, %cst_32 {dimension_numbers = #tpu.dot_dimension_numbers<[1], [0], [0], [1], [0, 0, 1, 1], [], []>} : vector<8x128xbf16>, vector<128x512xbf16>, vector<8x512xf32> -> vector<8x512xf32>
    %135 = arith.addf %132, %134 : vector<8x512xf32>
    %136 = vector.extract_strided_slice %135 {offsets = [0, 0], sizes = [8, 128], strides = [1, 1]} : vector<8x512xf32> to vector<8x128xf32>
    %137 = arith.negf %136 : vector<8x128xf32>
    %138 = math.exp %137 : vector<8x128xf32>
    %cst_33 = arith.constant 1.000000e+00 : f32
    %139 = vector.broadcast %cst_33 : f32 to vector<8x128xf32>
    %140 = arith.addf %139, %138 : vector<8x128xf32>
    %141 = arith.divf %139, %140 : vector<8x128xf32>
    %142 = vector.extract_strided_slice %135 {offsets = [0, 128], sizes = [8, 128], strides = [1, 1]} : vector<8x512xf32> to vector<8x128xf32>
    %143 = arith.negf %142 : vector<8x128xf32>
    %144 = math.exp %143 : vector<8x128xf32>
    %cst_34 = arith.constant 1.000000e+00 : f32
    %145 = vector.broadcast %cst_34 : f32 to vector<8x128xf32>
    %146 = arith.addf %145, %144 : vector<8x128xf32>
    %147 = arith.divf %145, %146 : vector<8x128xf32>
    %148 = vector.extract_strided_slice %135 {offsets = [0, 256], sizes = [8, 128], strides = [1, 1]} : vector<8x512xf32> to vector<8x128xf32>
    %149 = math.tanh %148 : vector<8x128xf32>
    %150 = vector.extract_strided_slice %135 {offsets = [0, 384], sizes = [8, 128], strides = [1, 1]} : vector<8x512xf32> to vector<8x128xf32>
    %151 = arith.negf %150 : vector<8x128xf32>
    %152 = math.exp %151 : vector<8x128xf32>
    %cst_35 = arith.constant 1.000000e+00 : f32
    %153 = vector.broadcast %cst_35 : f32 to vector<8x128xf32>
    %154 = arith.addf %153, %152 : vector<8x128xf32>
    %155 = arith.divf %153, %154 : vector<8x128xf32>
    %156 = arith.mulf %147, %127 : vector<8x128xf32>
    %157 = arith.mulf %141, %149 : vector<8x128xf32>
    %158 = arith.addf %156, %157 : vector<8x128xf32>
    %159 = math.tanh %158 : vector<8x128xf32>
    %160 = arith.mulf %155, %159 : vector<8x128xf32>
    %c5_i32 = arith.constant 5 : i32
    %161 = arith.index_cast %c5_i32 : i32 to index
    %c0_36 = arith.constant 0 : index
    %c0_37 = arith.constant 0 : index
    %162 = vector.load %arg2[%161, %c0_36, %c0_37] : memref<8x8x512xf32, #tpu.memory_space<vmem>>, vector<1x8x512xf32>
    %163 = vector.shape_cast %162 : vector<1x8x512xf32> to vector<8x512xf32>
    %164 = arith.truncf %160 : vector<8x128xf32> to vector<8x128xbf16>
    %cst_38 = arith.constant dense<0.000000e+00> : vector<8x512xf32>
    %165 = tpu.matmul %164, %3, %cst_38 {dimension_numbers = #tpu.dot_dimension_numbers<[1], [0], [0], [1], [0, 0, 1, 1], [], []>} : vector<8x128xbf16>, vector<128x512xbf16>, vector<8x512xf32> -> vector<8x512xf32>
    %166 = arith.addf %163, %165 : vector<8x512xf32>
    %167 = vector.extract_strided_slice %166 {offsets = [0, 0], sizes = [8, 128], strides = [1, 1]} : vector<8x512xf32> to vector<8x128xf32>
    %168 = arith.negf %167 : vector<8x128xf32>
    %169 = math.exp %168 : vector<8x128xf32>
    %cst_39 = arith.constant 1.000000e+00 : f32
    %170 = vector.broadcast %cst_39 : f32 to vector<8x128xf32>
    %171 = arith.addf %170, %169 : vector<8x128xf32>
    %172 = arith.divf %170, %171 : vector<8x128xf32>
    %173 = vector.extract_strided_slice %166 {offsets = [0, 128], sizes = [8, 128], strides = [1, 1]} : vector<8x512xf32> to vector<8x128xf32>
    %174 = arith.negf %173 : vector<8x128xf32>
    %175 = math.exp %174 : vector<8x128xf32>
    %cst_40 = arith.constant 1.000000e+00 : f32
    %176 = vector.broadcast %cst_40 : f32 to vector<8x128xf32>
    %177 = arith.addf %176, %175 : vector<8x128xf32>
    %178 = arith.divf %176, %177 : vector<8x128xf32>
    %179 = vector.extract_strided_slice %166 {offsets = [0, 256], sizes = [8, 128], strides = [1, 1]} : vector<8x512xf32> to vector<8x128xf32>
    %180 = math.tanh %179 : vector<8x128xf32>
    %181 = vector.extract_strided_slice %166 {offsets = [0, 384], sizes = [8, 128], strides = [1, 1]} : vector<8x512xf32> to vector<8x128xf32>
    %182 = arith.negf %181 : vector<8x128xf32>
    %183 = math.exp %182 : vector<8x128xf32>
    %cst_41 = arith.constant 1.000000e+00 : f32
    %184 = vector.broadcast %cst_41 : f32 to vector<8x128xf32>
    %185 = arith.addf %184, %183 : vector<8x128xf32>
    %186 = arith.divf %184, %185 : vector<8x128xf32>
    %187 = arith.mulf %178, %158 : vector<8x128xf32>
    %188 = arith.mulf %172, %180 : vector<8x128xf32>
    %189 = arith.addf %187, %188 : vector<8x128xf32>
    %190 = math.tanh %189 : vector<8x128xf32>
    %191 = arith.mulf %186, %190 : vector<8x128xf32>
    %c6_i32 = arith.constant 6 : i32
    %192 = arith.index_cast %c6_i32 : i32 to index
    %c0_42 = arith.constant 0 : index
    %c0_43 = arith.constant 0 : index
    %193 = vector.load %arg2[%192, %c0_42, %c0_43] : memref<8x8x512xf32, #tpu.memory_space<vmem>>, vector<1x8x512xf32>
    %194 = vector.shape_cast %193 : vector<1x8x512xf32> to vector<8x512xf32>
    %195 = arith.truncf %191 : vector<8x128xf32> to vector<8x128xbf16>
    %cst_44 = arith.constant dense<0.000000e+00> : vector<8x512xf32>
    %196 = tpu.matmul %195, %3, %cst_44 {dimension_numbers = #tpu.dot_dimension_numbers<[1], [0], [0], [1], [0, 0, 1, 1], [], []>} : vector<8x128xbf16>, vector<128x512xbf16>, vector<8x512xf32> -> vector<8x512xf32>
    %197 = arith.addf %194, %196 : vector<8x512xf32>
    %198 = vector.extract_strided_slice %197 {offsets = [0, 0], sizes = [8, 128], strides = [1, 1]} : vector<8x512xf32> to vector<8x128xf32>
    %199 = arith.negf %198 : vector<8x128xf32>
    %200 = math.exp %199 : vector<8x128xf32>
    %cst_45 = arith.constant 1.000000e+00 : f32
    %201 = vector.broadcast %cst_45 : f32 to vector<8x128xf32>
    %202 = arith.addf %201, %200 : vector<8x128xf32>
    %203 = arith.divf %201, %202 : vector<8x128xf32>
    %204 = vector.extract_strided_slice %197 {offsets = [0, 128], sizes = [8, 128], strides = [1, 1]} : vector<8x512xf32> to vector<8x128xf32>
    %205 = arith.negf %204 : vector<8x128xf32>
    %206 = math.exp %205 : vector<8x128xf32>
    %cst_46 = arith.constant 1.000000e+00 : f32
    %207 = vector.broadcast %cst_46 : f32 to vector<8x128xf32>
    %208 = arith.addf %207, %206 : vector<8x128xf32>
    %209 = arith.divf %207, %208 : vector<8x128xf32>
    %210 = vector.extract_strided_slice %197 {offsets = [0, 256], sizes = [8, 128], strides = [1, 1]} : vector<8x512xf32> to vector<8x128xf32>
    %211 = math.tanh %210 : vector<8x128xf32>
    %212 = vector.extract_strided_slice %197 {offsets = [0, 384], sizes = [8, 128], strides = [1, 1]} : vector<8x512xf32> to vector<8x128xf32>
    %213 = arith.negf %212 : vector<8x128xf32>
    %214 = math.exp %213 : vector<8x128xf32>
    %cst_47 = arith.constant 1.000000e+00 : f32
    %215 = vector.broadcast %cst_47 : f32 to vector<8x128xf32>
    %216 = arith.addf %215, %214 : vector<8x128xf32>
    %217 = arith.divf %215, %216 : vector<8x128xf32>
    %218 = arith.mulf %209, %189 : vector<8x128xf32>
    %219 = arith.mulf %203, %211 : vector<8x128xf32>
    %220 = arith.addf %218, %219 : vector<8x128xf32>
    %221 = math.tanh %220 : vector<8x128xf32>
    %222 = arith.mulf %217, %221 : vector<8x128xf32>
    %c7_i32 = arith.constant 7 : i32
    %223 = arith.index_cast %c7_i32 : i32 to index
    %c0_48 = arith.constant 0 : index
    %c0_49 = arith.constant 0 : index
    %224 = vector.load %arg2[%223, %c0_48, %c0_49] : memref<8x8x512xf32, #tpu.memory_space<vmem>>, vector<1x8x512xf32>
    %225 = vector.shape_cast %224 : vector<1x8x512xf32> to vector<8x512xf32>
    %226 = arith.truncf %222 : vector<8x128xf32> to vector<8x128xbf16>
    %cst_50 = arith.constant dense<0.000000e+00> : vector<8x512xf32>
    %227 = tpu.matmul %226, %3, %cst_50 {dimension_numbers = #tpu.dot_dimension_numbers<[1], [0], [0], [1], [0, 0, 1, 1], [], []>} : vector<8x128xbf16>, vector<128x512xbf16>, vector<8x512xf32> -> vector<8x512xf32>
    %228 = arith.addf %225, %227 : vector<8x512xf32>
    %229 = vector.extract_strided_slice %228 {offsets = [0, 0], sizes = [8, 128], strides = [1, 1]} : vector<8x512xf32> to vector<8x128xf32>
    %230 = arith.negf %229 : vector<8x128xf32>
    %231 = math.exp %230 : vector<8x128xf32>
    %cst_51 = arith.constant 1.000000e+00 : f32
    %232 = vector.broadcast %cst_51 : f32 to vector<8x128xf32>
    %233 = arith.addf %232, %231 : vector<8x128xf32>
    %234 = arith.divf %232, %233 : vector<8x128xf32>
    %235 = vector.extract_strided_slice %228 {offsets = [0, 128], sizes = [8, 128], strides = [1, 1]} : vector<8x512xf32> to vector<8x128xf32>
    %236 = arith.negf %235 : vector<8x128xf32>
    %237 = math.exp %236 : vector<8x128xf32>
    %cst_52 = arith.constant 1.000000e+00 : f32
    %238 = vector.broadcast %cst_52 : f32 to vector<8x128xf32>
    %239 = arith.addf %238, %237 : vector<8x128xf32>
    %240 = arith.divf %238, %239 : vector<8x128xf32>
    %241 = vector.extract_strided_slice %228 {offsets = [0, 256], sizes = [8, 128], strides = [1, 1]} : vector<8x512xf32> to vector<8x128xf32>
    %242 = math.tanh %241 : vector<8x128xf32>
    %243 = vector.extract_strided_slice %228 {offsets = [0, 384], sizes = [8, 128], strides = [1, 1]} : vector<8x512xf32> to vector<8x128xf32>
    %244 = arith.negf %243 : vector<8x128xf32>
    %245 = math.exp %244 : vector<8x128xf32>
    %cst_53 = arith.constant 1.000000e+00 : f32
    %246 = vector.broadcast %cst_53 : f32 to vector<8x128xf32>
    %247 = arith.addf %246, %245 : vector<8x128xf32>
    %248 = arith.divf %246, %247 : vector<8x128xf32>
    %249 = arith.mulf %240, %220 : vector<8x128xf32>
    %250 = arith.mulf %234, %242 : vector<8x128xf32>
    %251 = arith.addf %249, %250 : vector<8x128xf32>
    %252 = math.tanh %251 : vector<8x128xf32>
    %253 = arith.mulf %248, %252 : vector<8x128xf32>
    %c8_i32 = arith.constant 8 : i32
    %c0_54 = arith.constant 0 : index
    %c0_55 = arith.constant 0 : index
    %254 = vector.load %arg7[%c0_54, %c0_55] : memref<8x128xf32, #tpu.memory_space<vmem>>, vector<8x128xf32>
    tpu.vector_store %arg7[%c0_54, %c0_55], %253 {strides = array<i32>} : memref<8x128xf32, #tpu.memory_space<vmem>>, vector<8x128xf32>,
    %c0_56 = arith.constant 0 : index
    %c0_57 = arith.constant 0 : index
    %255 = vector.load %arg8[%c0_56, %c0_57] : memref<8x128xf32, #tpu.memory_space<vmem>>, vector<8x128xf32>
    tpu.vector_store %arg8[%c0_56, %c0_57], %251 {strides = array<i32>} : memref<8x128xf32, #tpu.memory_space<vmem>>, vector<8x128xf32>,
    %c0_i32_58 = arith.constant 0 : i32
    %256 = arith.cmpi eq, %arg1, %c0_i32_58 : i32
    %257 = arith.extui %256 : i1 to i32
    %c0_i32_59 = arith.constant 0 : i32
    %258 = arith.cmpi ne, %257, %c0_i32_59 : i32
    scf.if %258 {
      %c0_60 = arith.constant 0 : index
      %c0_61 = arith.constant 0 : index
      %259 = vector.load %arg4[%c0_60, %c0_61] : memref<128x128xf32, #tpu.memory_space<vmem>>, vector<128x128xf32>
      %cst_62 = arith.constant dense<0.000000e+00> : vector<8x128xf32>
      %260 = tpu.matmul %253, %259, %cst_62 {dimension_numbers = #tpu.dot_dimension_numbers<[1], [0], [0], [1], [0, 0, 1, 1], [], []>} : vector<8x128xf32>, vector<128x128xf32>, vector<8x128xf32> -> vector<8x128xf32>
      %c0_63 = arith.constant 0 : index
      %c0_64 = arith.constant 0 : index
      %261 = vector.load %arg5[%c0_63, %c0_64] : memref<1x128xf32, #tpu.memory_space<vmem>>, vector<1x128xf32>
      %262 = vector.broadcast %261 : vector<1x128xf32> to vector<8x128xf32>
      %263 = arith.addf %260, %262 : vector<8x128xf32>
      %cst_65 = arith.constant dense<0xFF800000> : vector<8xf32>
      %264 = vector.multi_reduction <maximumf>, %263, %cst_65 [1] : vector<8x128xf32> to vector<8xf32>
      %265 = vector.shape_cast %264 : vector<8xf32> to vector<8x1xf32>
      %266 = vector.broadcast %265 : vector<8x1xf32> to vector<8x128xf32>
      %267 = arith.subf %263, %266 : vector<8x128xf32>
      %268 = math.exp %267 : vector<8x128xf32>
      %cst_66 = arith.constant dense<0.000000e+00> : vector<8xf32>
      %269 = vector.multi_reduction <add>, %268, %cst_66 [1] : vector<8x128xf32> to vector<8xf32>
      %270 = vector.shape_cast %269 : vector<8xf32> to vector<8x1xf32>
      %271 = tpu.reciprocal %270 {approx = true} : vector<8x1xf32> -> vector<8x1xf32>
      %272 = arith.mulf %270, %271 : vector<8x1xf32>
      %cst_67 = arith.constant 2.000000e+00 : f32
      %273 = vector.broadcast %cst_67 : f32 to vector<8x1xf32>
      %274 = arith.subf %273, %272 : vector<8x1xf32>
      %275 = arith.mulf %271, %274 : vector<8x1xf32>
      %276 = vector.broadcast %275 : vector<8x1xf32> to vector<8x128xf32>
      %277 = arith.mulf %268, %276 : vector<8x128xf32>
      %c0_68 = arith.constant 0 : index
      %c0_69 = arith.constant 0 : index
      %278 = vector.load %arg6[%c0_68, %c0_69] : memref<8x128xf32, #tpu.memory_space<vmem>>, vector<8x128xf32>
      tpu.vector_store %arg6[%c0_68, %c0_69], %277 {strides = array<i32>} : memref<8x128xf32, #tpu.memory_space<vmem>>, vector<8x128xf32>,
    } else {
    }
    return
  }
  func.func @transform_0(%arg0: i32, %arg1: i32) -> (i32, i32, i32) {
    %c0_i32 = arith.constant 0 : i32
    %c0_i32_0 = arith.constant 0 : i32
    return %arg1, %arg0, %c0_i32 : i32, i32, i32
  }
  func.func @transform_1(%arg0: i32, %arg1: i32) -> (i32, i32) {
    %c0_i32 = arith.constant 0 : i32
    %c0_i32_0 = arith.constant 0 : i32
    %c0_i32_1 = arith.constant 0 : i32
    return %c0_i32, %c0_i32_0 : i32, i32
  }
  func.func @transform_2(%arg0: i32, %arg1: i32) -> (i32, i32) {
    %c0_i32 = arith.constant 0 : i32
    %c0_i32_0 = arith.constant 0 : i32
    %c0_i32_1 = arith.constant 0 : i32
    return %c0_i32, %c0_i32_0 : i32, i32
  }
  func.func @transform_3(%arg0: i32, %arg1: i32) -> (i32, i32) {
    %c0_i32 = arith.constant 0 : i32
    %c0_i32_0 = arith.constant 0 : i32
    %c0_i32_1 = arith.constant 0 : i32
    return %c0_i32, %c0_i32_0 : i32, i32
  }
  func.func @transform_4(%arg0: i32, %arg1: i32) -> (i32, i32) {
    %c0_i32 = arith.constant 0 : i32
    %c0_i32_0 = arith.constant 0 : i32
    return %arg0, %c0_i32 : i32, i32
  }
}

</mosaic_0001>

<llo_original>
// kernel: text_lstm_forward.1
$region0: #{text_lstm_forward.1}
  #allocation0 [shape = 'u32[]', space=smem, size = 0x4, offset = 0x4, fixed_abs, tag = 'smem constant byte address 0x4 - core index']
  #allocation1 [shape = 'u32[144,128]{1,0:T(1,128)}', space=vmem, size = 0x12000, scoped, tag = 'internal scratch']
  #allocation2 [shape = 'f32[8,128]{1,0:T(8,128)}', space=vmem, size = 0x1000, scoped, tag = 'scratch operand']
  #allocation3 [shape = 'f32[8,128]{1,0:T(8,128)}', space=vmem, size = 0x1000, scoped, tag = 'scratch operand']
  %s0 = inlined_call_operand.vmem [shape: f32[8,8,512], index: 0, kind: input, shape index: {}]
  %s1 = inlined_call_operand.vmem [shape: bf16[128,512], index: 1, kind: input, shape index: {}]
  %s2 = inlined_call_operand.vmem [shape: f32[128,128], index: 2, kind: input, shape index: {}]
  %s3 = inlined_call_operand.vmem [shape: f32[1,128], index: 3, kind: input, shape index: {}]
  %s4 = inlined_call_operand.vmem [shape: f32[8,128], index: 4, kind: output, shape index: {}]
  %s5 = sld [smem:[#allocation0]]
  $region34: #{text_lstm_forward.1} parent=0
    _
  %s7 = ssub.s32 1, %s5
  %s8 = scalar_select 0, %s7, %s5
  // Predicated region
  $region2: #{text_lstm_forward.1} parent=0 // pred_check
    _
  $region3: #{text_lstm_forward.1} parent=0 // pred_check_branch
    %10 = sbr.rel (0) target = $region5
  $region4: #{text_lstm_forward.1} parent=0 // pred_region
    _
  $region5: #{text_lstm_forward.1} parent=0 // pred_fallthru
    _
  // Predicated region
  $region6: #{text_lstm_forward.1} parent=0 // pred_check
    _
  $region7: #{text_lstm_forward.1} parent=0 // pred_check_branch
    %12 = sbr.rel (0) target = $region9
  $region8: #{text_lstm_forward.1} parent=0 // pred_region
    _
  $region9: #{text_lstm_forward.1} parent=0 // pred_fallthru
    _
  // Predicated region
  $region10: #{text_lstm_forward.1} parent=0 // pred_check
    _
  $region11: #{text_lstm_forward.1} parent=0 // pred_check_branch
    %14 = sbr.rel (0) target = $region13
  $region12: #{text_lstm_forward.1} parent=0 // pred_region
    _
  $region13: #{text_lstm_forward.1} parent=0 // pred_fallthru
    _
  // Predicated region
  $region14: #{text_lstm_forward.1} parent=0 // pred_check
    _
  $region15: #{text_lstm_forward.1} parent=0 // pred_check_branch
    %16 = sbr.rel (0) target = $region17
  $region16: #{text_lstm_forward.1} parent=0 // pred_region
    _
  $region17: #{text_lstm_forward.1} parent=0 // pred_fallthru
    _
  %p18 = scmp.eq.s32.totalorder 0, 0
  // Predicated region
  $region18: #{text_lstm_forward.1} parent=0 // pred_check
    %p19 = pneg %p18
  $region19: #{text_lstm_forward.1} parent=0 // pred_check_branch
    %21 = sbr.rel (%p19) target = $region21
  $region20: #{text_lstm_forward.1} parent=0 // pred_region
    %22 = vst [vmem:[#allocation2] sm:$0xff] 0.0
    %23 = vst [vmem:[#allocation3] sm:$0xff] 0.0
  $region21: #{text_lstm_forward.1} parent=0 // pred_fallthru
    _
  %v24 = vld [vmem:[%s1] sm:$0xff]
  %v25 = vld [vmem:[%s1 + $0x8] sm:$0xff]
  %v26 = vld [vmem:[%s1 + $0x10] sm:$0xff]
  %v27 = vld [vmem:[%s1 + $0x18] sm:$0xff]
  %v28 = vld [vmem:[%s1 + $0x20] sm:$0xff]
  %v29 = vld [vmem:[%s1 + $0x28] sm:$0xff]
  %v30 = vld [vmem:[%s1 + $0x30] sm:$0xff]
  %v31 = vld [vmem:[%s1 + $0x38] sm:$0xff]
  %v32 = vld [vmem:[%s1 + $0x40] sm:$0xff]
  %v33 = vld [vmem:[%s1 + $0x48] sm:$0xff]
  %v34 = vld [vmem:[%s1 + $0x50] sm:$0xff]
  %v35 = vld [vmem:[%s1 + $0x58] sm:$0xff]
  %v36 = vld [vmem:[%s1 + $0x60] sm:$0xff]
  %v37 = vld [vmem:[%s1 + $0x68] sm:$0xff]
  %v38 = vld [vmem:[%s1 + $0x70] sm:$0xff]
  %v39 = vld [vmem:[%s1 + $0x78] sm:$0xff]
  %v40 = vld [vmem:[%s1 + $0x80] sm:$0xff]
  %v41 = vld [vmem:[%s1 + $0x88] sm:$0xff]
  %v42 = vld [vmem:[%s1 + $0x90] sm:$0xff]
  %v43 = vld [vmem:[%s1 + $0x98] sm:$0xff]
  %v44 = vld [vmem:[%s1 + $0xa0] sm:$0xff]
  %v45 = vld [vmem:[%s1 + $0xa8] sm:$0xff]
  %v46 = vld [vmem:[%s1 + $0xb0] sm:$0xff]
  %v47 = vld [vmem:[%s1 + $0xb8] sm:$0xff]
  %v48 = vld [vmem:[%s1 + $0xc0] sm:$0xff]
  %v49 = vld [vmem:[%s1 + $0xc8] sm:$0xff]
  %v50 = vld [vmem:[%s1 + $0xd0] sm:$0xff]
  %v51 = vld [vmem:[%s1 + $0xd8] sm:$0xff]
  %v52 = vld [vmem:[%s1 + $0xe0] sm:$0xff]
  %v53 = vld [vmem:[%s1 + $0xe8] sm:$0xff]
  %v54 = vld [vmem:[%s1 + $0xf0] sm:$0xff]
  %v55 = vld [vmem:[%s1 + $0xf8] sm:$0xff]
  %v56 = vld [vmem:[#allocation2] sm:$0xff]
  %v57 = vld [vmem:[#allocation3] sm:$0xff]
  %v58 = vld [vmem:[%s0] sm:$0xff]
  %v59 = vld [vmem:[%s0 + $0x8] sm:$0xff]
  %v60 = vld [vmem:[%s0 + $0x10] sm:$0xff]
  %v61 = vld [vmem:[%s0 + $0x18] sm:$0xff]
  %v62 = vpack.c.bf16 %v56, %v56
  %v95 = vunpack.c.l.b16 %v24
  %v96 = vunpack.c.h.b16 %v24
  %v97 = vunpack.c.l.b16 %v25
  %v98 = vunpack.c.h.b16 %v25
  %v99 = vunpack.c.l.b16 %v26
  %v100 = vunpack.c.h.b16 %v26
  %v101 = vunpack.c.l.b16 %v27
  %v102 = vunpack.c.h.b16 %v27
  %v103 = vunpack.c.l.b16 %v28
  %v104 = vunpack.c.h.b16 %v28
  %v105 = vunpack.c.l.b16 %v29
  %v106 = vunpack.c.h.b16 %v29
  %v107 = vunpack.c.l.b16 %v30
  %v108 = vunpack.c.h.b16 %v30
  %v109 = vunpack.c.l.b16 %v31
  %v110 = vunpack.c.h.b16 %v31
  %v111 = vunpack.c.l.b16 %v32
  %v112 = vunpack.c.h.b16 %v32
  %v113 = vunpack.c.l.b16 %v33
  %v114 = vunpack.c.h.b16 %v33
  %v115 = vunpack.c.l.b16 %v34
  %v116 = vunpack.c.h.b16 %v34
  %v117 = vunpack.c.l.b16 %v35
  %v118 = vunpack.c.h.b16 %v35
  %v119 = vunpack.c.l.b16 %v36
  %v120 = vunpack.c.h.b16 %v36
  %v121 = vunpack.c.l.b16 %v37
  %v122 = vunpack.c.h.b16 %v37
  %v123 = vunpack.c.l.b16 %v38
  %v124 = vunpack.c.h.b16 %v38
  %v125 = vunpack.c.l.b16 %v39
  %v126 = vunpack.c.h.b16 %v39
  %v127 = vunpack.c.l.b16 %v40
  %v128 = vunpack.c.h.b16 %v40
  %v129 = vunpack.c.l.b16 %v41
  %v130 = vunpack.c.h.b16 %v41
  %v131 = vunpack.c.l.b16 %v42
  %v132 = vunpack.c.h.b16 %v42
  %v133 = vunpack.c.l.b16 %v43
  %v134 = vunpack.c.h.b16 %v43
  %v135 = vunpack.c.l.b16 %v44
  %v136 = vunpack.c.h.b16 %v44
  %v137 = vunpack.c.l.b16 %v45
  %v138 = vunpack.c.h.b16 %v45
  %v139 = vunpack.c.l.b16 %v46
  %v140 = vunpack.c.h.b16 %v46
  %v141 = vunpack.c.l.b16 %v47
  %v142 = vunpack.c.h.b16 %v47
  %v143 = vunpack.c.l.b16 %v48
  %v144 = vunpack.c.h.b16 %v48
  %v145 = vunpack.c.l.b16 %v49
  %v146 = vunpack.c.h.b16 %v49
  %v147 = vunpack.c.l.b16 %v50
  %v148 = vunpack.c.h.b16 %v50
  %v149 = vunpack.c.l.b16 %v51
  %v150 = vunpack.c.h.b16 %v51
  %v151 = vunpack.c.l.b16 %v52
  %v152 = vunpack.c.h.b16 %v52
  %v153 = vunpack.c.l.b16 %v53
  %v154 = vunpack.c.h.b16 %v53
  %v155 = vunpack.c.l.b16 %v54
  %v156 = vunpack.c.h.b16 %v54
  %v157 = vunpack.c.l.b16 %v55
  %v158 = vunpack.c.h.b16 %v55
  %v159 = vpack.c.b16 %v99, %v95
  %v160 = vpack.c.b16 %v100, %v96
  %v161 = vpack.c.b16 %v101, %v97
  %v162 = vpack.c.b16 %v102, %v98
  %v163 = vpack.c.b16 %v107, %v103
  %v164 = vpack.c.b16 %v108, %v104
  %v165 = vpack.c.b16 %v109, %v105
  %v166 = vpack.c.b16 %v110, %v106
  %v167 = vpack.c.b16 %v115, %v111
  %v168 = vpack.c.b16 %v116, %v112
  %v169 = vpack.c.b16 %v117, %v113
  %v170 = vpack.c.b16 %v118, %v114
  %v171 = vpack.c.b16 %v123, %v119
  %v172 = vpack.c.b16 %v124, %v120
  %v173 = vpack.c.b16 %v125, %v121
  %v174 = vpack.c.b16 %v126, %v122
  %v175 = vpack.c.b16 %v131, %v127
  %v176 = vpack.c.b16 %v132, %v128
  %v177 = vpack.c.b16 %v133, %v129
  %v178 = vpack.c.b16 %v134, %v130
  %v179 = vpack.c.b16 %v139, %v135
  %v180 = vpack.c.b16 %v140, %v136
  %v181 = vpack.c.b16 %v141, %v137
  %v182 = vpack.c.b16 %v142, %v138
  %v183 = vpack.c.b16 %v147, %v143
  %v184 = vpack.c.b16 %v148, %v144
  %v185 = vpack.c.b16 %v149, %v145
  %v186 = vpack.c.b16 %v150, %v146
  %v187 = vpack.c.b16 %v155, %v151
  %v188 = vpack.c.b16 %v156, %v152
  %v189 = vpack.c.b16 %v157, %v153
  %v190 = vpack.c.b16 %v158, %v154
  %223 = vmatprep.subr.bf16.mxu0 %v160
  %224 = vmatpush1.bf16.msra.mxu0 %v159
  %225 = vmatprep.subr.bf16.mxu0 %v164
  %226 = vmatpush1.bf16.msra.mxu0 %v163
  %227 = vmatprep.subr.bf16.mxu0 %v168
  %228 = vmatpush1.bf16.msra.mxu0 %v167
  %229 = vmatprep.subr.bf16.mxu0 %v172
  %230 = vmatpush1.bf16.msra.mxu0 %v171
  %231 = vmatprep.subr.bf16.mxu0 %v176
  %232 = vmatpush1.bf16.msra.mxu0 %v175
  %233 = vmatprep.subr.bf16.mxu0 %v180
  %234 = vmatpush1.bf16.msra.mxu0 %v179
  %235 = vmatprep.subr.bf16.mxu0 %v184
  %236 = vmatpush1.bf16.msra.mxu0 %v183
  %237 = vmatprep.subr.bf16.mxu0 %v188
  %238 = vmatpush1.bf16.msra.mxu0 %v187
  %239 = vmatprep.subr.bf16.mxu0 0
  %240 = vmatpush1.bf16.msra.mxu0 0
  %241 = vmatprep.subr.bf16.mxu0 0
  %242 = vmatpush1.bf16.msra.mxu0 0
  %243 = vmatprep.subr.bf16.mxu0 0
  %244 = vmatpush1.bf16.msra.mxu0 0
  %245 = vmatprep.subr.bf16.mxu0 0
  %246 = vmatpush1.bf16.msra.mxu0 0
  %247 = vmatprep.subr.bf16.mxu0 0
  %248 = vmatpush1.bf16.msra.mxu0 0
  %249 = vmatprep.subr.bf16.mxu0 0
  %250 = vmatpush1.bf16.msra.mxu0 0
  %251 = vmatprep.subr.bf16.mxu0 0
  %252 = vmatpush1.bf16.msra.mxu0 0
  %253 = vmatprep.subr.bf16.mxu0 0
  %254 = vmatpush1.bf16.msra.mxu0 0
  %255 = vmatprep.mubr.bf16.mxu0 0
  %256 = vmatmul.mubr.bf16.gmra.mrb[0].mxu0 %v62
  %v257 = vpop.f32.mrb[0].mxu0
  %v258 = vadd.f32 0.0, %v257
  %v259 = vpop.f32.mrb[0].mxu0
  %v260 = vadd.f32 0.0, %v259
  %v261 = vpop.f32.mrb[0].mxu0
  %v262 = vpop.f32.mrb[0].mxu0
  %263 = vdwg.mxu0
  %264 = vmatprep.subr.bf16.mxu0 %v162
  %265 = vmatpush1.bf16.msra.mxu0 %v161
  %266 = vmatprep.subr.bf16.mxu0 %v166
  %267 = vmatpush1.bf16.msra.mxu0 %v165
  %268 = vmatprep.subr.bf16.mxu0 %v170
  %269 = vmatpush1.bf16.msra.mxu0 %v169
  %270 = vmatprep.subr.bf16.mxu0 %v174
  %271 = vmatpush1.bf16.msra.mxu0 %v173
  %272 = vmatprep.subr.bf16.mxu0 %v178
  %273 = vmatpush1.bf16.msra.mxu0 %v177
  %274 = vmatprep.subr.bf16.mxu0 %v182
  %275 = vmatpush1.bf16.msra.mxu0 %v181
  %276 = vmatprep.subr.bf16.mxu0 %v186
  %277 = vmatpush1.bf16.msra.mxu0 %v185
  %278 = vmatprep.subr.bf16.mxu0 %v190
  %279 = vmatpush1.bf16.msra.mxu0 %v189
  %280 = vmatprep.subr.bf16.mxu0 0
  %281 = vmatpush1.bf16.msra.mxu0 0
  %282 = vmatprep.subr.bf16.mxu0 0
  %283 = vmatpush1.bf16.msra.mxu0 0
  %284 = vmatprep.subr.bf16.mxu0 0
  %285 = vmatpush1.bf16.msra.mxu0 0
  %286 = vmatprep.subr.bf16.mxu0 0
  %287 = vmatpush1.bf16.msra.mxu0 0
  %288 = vmatprep.subr.bf16.mxu0 0
  %289 = vmatpush1.bf16.msra.mxu0 0
  %290 = vmatprep.subr.bf16.mxu0 0
  %291 = vmatpush1.bf16.msra.mxu0 0
  %292 = vmatprep.subr.bf16.mxu0 0
  %293 = vmatpush1.bf16.msra.mxu0 0
  %294 = vmatprep.subr.bf16.mxu0 0
  %295 = vmatpush1.bf16.msra.mxu0 0
  %296 = vmatprep.mubr.bf16.mxu0 0
  %297 = vmatmul.mubr.bf16.gmra.mrb[0].mxu0 %v62
  %v298 = vpop.f32.mrb[0].mxu0
  %v299 = vadd.f32 0.0, %v298
  %v300 = vpop.f32.mrb[0].mxu0
  %v301 = vadd.f32 0.0, %v300
  %v302 = vpop.f32.mrb[0].mxu0
  %v303 = vpop.f32.mrb[0].mxu0
  %304 = vdwg.mxu0
  %v305 = vadd.f32 %v58, %v258
  %v306 = vadd.f32 %v59, %v260
  %v307 = vadd.f32 %v60, %v299
  %v308 = vadd.f32 %v61, %v301
  %v309 = vxor.u32 %v305, 2147483648
  %v310 = vmul.f32 %v309, 1.442695
  %v311 = vpow.pop %v310
  %v312 = vadd.f32 %v311, 1.0
  %v313 = vrcp.pop %v312
  %v314 = vmul.f32 1.0, %v313
  %v315 = vxor.u32 %v306, 2147483648
  %v316 = vmul.f32 %v315, 1.442695
  %v317 = vpow.pop %v316
  %v318 = vadd.f32 %v317, 1.0
  %v319 = vrcp.pop %v318
  %v320 = vmul.f32 1.0, %v319
  %v321 = vtanh.pop %v307
  %v322 = vxor.u32 %v308, 2147483648
  %v323 = vmul.f32 %v322, 1.442695
  %v324 = vpow.pop %v323
  %v325 = vadd.f32 %v324, 1.0
  %v326 = vrcp.pop %v325
  %v327 = vmul.f32 1.0, %v326
  %v328 = vmul.f32 %v320, %v57
  %v329 = vmul.f32 %v314, %v321
  %v330 = vadd.f32 %v328, %v329
  %v331 = vtanh.pop %v330
  %v332 = vmul.f32 %v327, %v331
  %s333 = scalar_lea.vmem %s0, 32
  %v334 = vld [vmem:[%s333] sm:$0xff]
  %v335 = vld [vmem:[%s333 + $0x8] sm:$0xff]
  %v336 = vld [vmem:[%s333 + $0x10] sm:$0xff]
  %v337 = vld [vmem:[%s333 + $0x18] sm:$0xff]
  %v338 = vpack.c.bf16 %v332, %v332
  %339 = vmatprep.subr.bf16.mxu0 %v160
  %340 = vmatpush1.bf16.msra.mxu0 %v159
  %341 = vmatprep.subr.bf16.mxu0 %v164
  %342 = vmatpush1.bf16.msra.mxu0 %v163
  %343 = vmatprep.subr.bf16.mxu0 %v168
  %344 = vmatpush1.bf16.msra.mxu0 %v167
  %345 = vmatprep.subr.bf16.mxu0 %v172
  %346 = vmatpush1.bf16.msra.mxu0 %v171
  %347 = vmatprep.subr.bf16.mxu0 %v176
  %348 = vmatpush1.bf16.msra.mxu0 %v175
  %349 = vmatprep.subr.bf16.mxu0 %v180
  %350 = vmatpush1.bf16.msra.mxu0 %v179
  %351 = vmatprep.subr.bf16.mxu0 %v184
  %352 = vmatpush1.bf16.msra.mxu0 %v183
  %353 = vmatprep.subr.bf16.mxu0 %v188
  %354 = vmatpush1.bf16.msra.mxu0 %v187
  %355 = vmatprep.subr.bf16.mxu0 0
  %356 = vmatpush1.bf16.msra.mxu0 0
  %357 = vmatprep.subr.bf16.mxu0 0
  %358 = vmatpush1.bf16.msra.mxu0 0
  %359 = vmatprep.subr.bf16.mxu0 0
  %360 = vmatpush1.bf16.msra.mxu0 0
  %361 = vmatprep.subr.bf16.mxu0 0
  %362 = vmatpush1.bf16.msra.mxu0 0
  %363 = vmatprep.subr.bf16.mxu0 0
  %364 = vmatpush1.bf16.msra.mxu0 0
  %365 = vmatprep.subr.bf16.mxu0 0
  %366 = vmatpush1.bf16.msra.mxu0 0
  %367 = vmatprep.subr.bf16.mxu0 0
  %368 = vmatpush1.bf16.msra.mxu0 0
  %369 = vmatprep.subr.bf16.mxu0 0
  %370 = vmatpush1.bf16.msra.mxu0 0
  %371 = vmatprep.mubr.bf16.mxu0 0
  %372 = vmatmul.mubr.bf16.gmra.mrb[0].mxu0 %v338
  %v373 = vpop.f32.mrb[0].mxu0
  %v374 = vadd.f32 0.0, %v373
  %v375 = vpop.f32.mrb[0].mxu0
  %v376 = vadd.f32 0.0, %v375
  %v377 = vpop.f32.mrb[0].mxu0
  %v378 = vpop.f32.mrb[0].mxu0
  %379 = vdwg.mxu0
  %380 = vmatprep.subr.bf16.mxu0 %v162
  %381 = vmatpush1.bf16.msra.mxu0 %v161
  %382 = vmatprep.subr.bf16.mxu0 %v166
  %383 = vmatpush1.bf16.msra.mxu0 %v165
  %384 = vmatprep.subr.bf16.mxu0 %v170
  %385 = vmatpush1.bf16.msra.mxu0 %v169
  %386 = vmatprep.subr.bf16.mxu0 %v174
  %387 = vmatpush1.bf16.msra.mxu0 %v173
  %388 = vmatprep.subr.bf16.mxu0 %v178
  %389 = vmatpush1.bf16.msra.mxu0 %v177
  %390 = vmatprep.subr.bf16.mxu0 %v182
  %391 = vmatpush1.bf16.msra.mxu0 %v181
  %392 = vmatprep.subr.bf16.mxu0 %v186
  %393 = vmatpush1.bf16.msra.mxu0 %v185
  %394 = vmatprep.subr.bf16.mxu0 %v190
  %395 = vmatpush1.bf16.msra.mxu0 %v189
  %396 = vmatprep.subr.bf16.mxu0 0
  %397 = vmatpush1.bf16.msra.mxu0 0
  %398 = vmatprep.subr.bf16.mxu0 0
  %399 = vmatpush1.bf16.msra.mxu0 0
  %400 = vmatprep.subr.bf16.mxu0 0
  %401 = vmatpush1.bf16.msra.mxu0 0
  %402 = vmatprep.subr.bf16.mxu0 0
  %403 = vmatpush1.bf16.msra.mxu0 0
  %404 = vmatprep.subr.bf16.mxu0 0
  %405 = vmatpush1.bf16.msra.mxu0 0
  %406 = vmatprep.subr.bf16.mxu0 0
  %407 = vmatpush1.bf16.msra.mxu0 0
  %408 = vmatprep.subr.bf16.mxu0 0
  %409 = vmatpush1.bf16.msra.mxu0 0
  %410 = vmatprep.subr.bf16.mxu0 0
  %411 = vmatpush1.bf16.msra.mxu0 0
  %412 = vmatprep.mubr.bf16.mxu0 0
  %413 = vmatmul.mubr.bf16.gmra.mrb[0].mxu0 %v338
  %v414 = vpop.f32.mrb[0].mxu0
  %v415 = vadd.f32 0.0, %v414
  %v416 = vpop.f32.mrb[0].mxu0
  %v417 = vadd.f32 0.0, %v416
  %v418 = vpop.f32.mrb[0].mxu0
  %v419 = vpop.f32.mrb[0].mxu0
  %420 = vdwg.mxu0
  %v421 = vadd.f32 %v334, %v374
  %v422 = vadd.f32 %v335, %v376
  %v423 = vadd.f32 %v336, %v415
  %v424 = vadd.f32 %v337, %v417
  %v425 = vxor.u32 %v421, 2147483648
  %v426 = vmul.f32 %v425, 1.442695
  %v427 = vpow.pop %v426
  %v428 = vadd.f32 %v427, 1.0
  %v429 = vrcp.pop %v428
  %v430 = vmul.f32 1.0, %v429
  %v431 = vxor.u32 %v422, 2147483648
  %v432 = vmul.f32 %v431, 1.442695
  %v433 = vpow.pop %v432
  %v434 = vadd.f32 %v433, 1.0
  %v435 = vrcp.pop %v434
  %v436 = vmul.f32 1.0, %v435
  %v437 = vtanh.pop %v423
  %v438 = vxor.u32 %v424, 2147483648
  %v439 = vmul.f32 %v438, 1.442695
  %v440 = vpow.pop %v439
  %v441 = vadd.f32 %v440, 1.0
  %v442 = vrcp.pop %v441
  %v443 = vmul.f32 1.0, %v442
  %v444 = vmul.f32 %v436, %v330
  %v445 = vmul.f32 %v430, %v437
  %v446 = vadd.f32 %v444, %v445
  %v447 = vtanh.pop %v446
  %v448 = vmul.f32 %v443, %v447
  %s449 = scalar_lea.vmem %s0, 64
  %v450 = vld [vmem:[%s449] sm:$0xff]
  %v451 = vld [vmem:[%s449 + $0x8] sm:$0xff]
  %v452 = vld [vmem:[%s449 + $0x10] sm:$0xff]
  %v453 = vld [vmem:[%s449 + $0x18] sm:$0xff]
  %v454 = vpack.c.bf16 %v448, %v448
  %455 = vmatprep.subr.bf16.mxu0 %v160
  %456 = vmatpush1.bf16.msra.mxu0 %v159
  %457 = vmatprep.subr.bf16.mxu0 %v164
  %458 = vmatpush1.bf16.msra.mxu0 %v163
  %459 = vmatprep.subr.bf16.mxu0 %v168
  %460 = vmatpush1.bf16.msra.mxu0 %v167
  %461 = vmatprep.subr.bf16.mxu0 %v172
  %462 = vmatpush1.bf16.msra.mxu0 %v171
  %463 = vmatprep.subr.bf16.mxu0 %v176
  %464 = vmatpush1.bf16.msra.mxu0 %v175
  %465 = vmatprep.subr.bf16.mxu0 %v180
  %466 = vmatpush1.bf16.msra.mxu0 %v179
  %467 = vmatprep.subr.bf16.mxu0 %v184
  %468 = vmatpush1.bf16.msra.mxu0 %v183
  %469 = vmatprep.subr.bf16.mxu0 %v188
  %470 = vmatpush1.bf16.msra.mxu0 %v187
  %471 = vmatprep.subr.bf16.mxu0 0
  %472 = vmatpush1.bf16.msra.mxu0 0
  %473 = vmatprep.subr.bf16.mxu0 0
  %474 = vmatpush1.bf16.msra.mxu0 0
  %475 = vmatprep.subr.bf16.mxu0 0
  %476 = vmatpush1.bf16.msra.mxu0 0
  %477 = vmatprep.subr.bf16.mxu0 0
  %478 = vmatpush1.bf16.msra.mxu0 0
  %479 = vmatprep.subr.bf16.mxu0 0
  %480 = vmatpush1.bf16.msra.mxu0 0
  %481 = vmatprep.subr.bf16.mxu0 0
  %482 = vmatpush1.bf16.msra.mxu0 0
  %483 = vmatprep.subr.bf16.mxu0 0
  %484 = vmatpush1.bf16.msra.mxu0 0
  %485 = vmatprep.subr.bf16.mxu0 0
  %486 = vmatpush1.bf16.msra.mxu0 0
  %487 = vmatprep.mubr.bf16.mxu0 0
  %488 = vmatmul.mubr.bf16.gmra.mrb[0].mxu0 %v454
  %v489 = vpop.f32.mrb[0].mxu0
  %v490 = vadd.f32 0.0, %v489
  %v491 = vpop.f32.mrb[0].mxu0
  %v492 = vadd.f32 0.0, %v491
  %v493 = vpop.f32.mrb[0].mxu0
  %v494 = vpop.f32.mrb[0].mxu0
  %495 = vdwg.mxu0
  %496 = vmatprep.subr.bf16.mxu0 %v162
  %497 = vmatpush1.bf16.msra.mxu0 %v161
  %498 = vmatprep.subr.bf16.mxu0 %v166
  %499 = vmatpush1.bf16.msra.mxu0 %v165
  %500 = vmatprep.subr.bf16.mxu0 %v170
  %501 = vmatpush1.bf16.msra.mxu0 %v169
  %502 = vmatprep.subr.bf16.mxu0 %v174
  %503 = vmatpush1.bf16.msra.mxu0 %v173
  %504 = vmatprep.subr.bf16.mxu0 %v178
  %505 = vmatpush1.bf16.msra.mxu0 %v177
  %506 = vmatprep.subr.bf16.mxu0 %v182
  %507 = vmatpush1.bf16.msra.mxu0 %v181
  %508 = vmatprep.subr.bf16.mxu0 %v186
  %509 = vmatpush1.bf16.msra.mxu0 %v185
  %510 = vmatprep.subr.bf16.mxu0 %v190
  %511 = vmatpush1.bf16.msra.mxu0 %v189
  %512 = vmatprep.subr.bf16.mxu0 0
  %513 = vmatpush1.bf16.msra.mxu0 0
  %514 = vmatprep.subr.bf16.mxu0 0
  %515 = vmatpush1.bf16.msra.mxu0 0
  %516 = vmatprep.subr.bf16.mxu0 0
  %517 = vmatpush1.bf16.msra.mxu0 0
  %518 = vmatprep.subr.bf16.mxu0 0
  %519 = vmatpush1.bf16.msra.mxu0 0
  %520 = vmatprep.subr.bf16.mxu0 0
  %521 = vmatpush1.bf16.msra.mxu0 0
  %522 = vmatprep.subr.bf16.mxu0 0
  %523 = vmatpush1.bf16.msra.mxu0 0
  %524 = vmatprep.subr.bf16.mxu0 0
  %525 = vmatpush1.bf16.msra.mxu0 0
  %526 = vmatprep.subr.bf16.mxu0 0
  %527 = vmatpush1.bf16.msra.mxu0 0
  %528 = vmatprep.mubr.bf16.mxu0 0
  %529 = vmatmul.mubr.bf16.gmra.mrb[0].mxu0 %v454
  %v530 = vpop.f32.mrb[0].mxu0
  %v531 = vadd.f32 0.0, %v530
  %v532 = vpop.f32.mrb[0].mxu0
  %v533 = vadd.f32 0.0, %v532
  %v534 = vpop.f32.mrb[0].mxu0
  %v535 = vpop.f32.mrb[0].mxu0
  %536 = vdwg.mxu0
  %v537 = vadd.f32 %v450, %v490
  %v538 = vadd.f32 %v451, %v492
  %v539 = vadd.f32 %v452, %v531
  %v540 = vadd.f32 %v453, %v533
  %v541 = vxor.u32 %v537, 2147483648
  %v542 = vmul.f32 %v541, 1.442695
  %v543 = vpow.pop %v542
  %v544 = vadd.f32 %v543, 1.0
  %v545 = vrcp.pop %v544
  %v546 = vmul.f32 1.0, %v545
  %v547 = vxor.u32 %v538, 2147483648
  %v548 = vmul.f32 %v547, 1.442695
  %v549 = vpow.pop %v548
  %v550 = vadd.f32 %v549, 1.0
  %v551 = vrcp.pop %v550
  %v552 = vmul.f32 1.0, %v551
  %v553 = vtanh.pop %v539
  %v554 = vxor.u32 %v540, 2147483648
  %v555 = vmul.f32 %v554, 1.442695
  %v556 = vpow.pop %v555
  %v557 = vadd.f32 %v556, 1.0
  %v558 = vrcp.pop %v557
  %v559 = vmul.f32 1.0, %v558
  %v560 = vmul.f32 %v552, %v446
  %v561 = vmul.f32 %v546, %v553
  %v562 = vadd.f32 %v560, %v561
  %v563 = vtanh.pop %v562
  %v564 = vmul.f32 %v559, %v563
  %s565 = scalar_lea.vmem %s0, 96
  %v566 = vld [vmem:[%s565] sm:$0xff]
  %v567 = vld [vmem:[%s565 + $0x8] sm:$0xff]
  %v568 = vld [vmem:[%s565 + $0x10] sm:$0xff]
  %v569 = vld [vmem:[%s565 + $0x18] sm:$0xff]
  %v570 = vpack.c.bf16 %v564, %v564
  %571 = vmatprep.subr.bf16.mxu0 %v160
  %572 = vmatpush1.bf16.msra.mxu0 %v159
  %573 = vmatprep.subr.bf16.mxu0 %v164
  %574 = vmatpush1.bf16.msra.mxu0 %v163
  %575 = vmatprep.subr.bf16.mxu0 %v168
  %576 = vmatpush1.bf16.msra.mxu0 %v167
  %577 = vmatprep.subr.bf16.mxu0 %v172
  %578 = vmatpush1.bf16.msra.mxu0 %v171
  %579 = vmatprep.subr.bf16.mxu0 %v176
  %580 = vmatpush1.bf16.msra.mxu0 %v175
  %581 = vmatprep.subr.bf16.mxu0 %v180
  %582 = vmatpush1.bf16.msra.mxu0 %v179
  %583 = vmatprep.subr.bf16.mxu0 %v184
  %584 = vmatpush1.bf16.msra.mxu0 %v183
  %585 = vmatprep.subr.bf16.mxu0 %v188
  %586 = vmatpush1.bf16.msra.mxu0 %v187
  %587 = vmatprep.subr.bf16.mxu0 0
  %588 = vmatpush1.bf16.msra.mxu0 0
  %589 = vmatprep.subr.bf16.mxu0 0
  %590 = vmatpush1.bf16.msra.mxu0 0
  %591 = vmatprep.subr.bf16.mxu0 0
  %592 = vmatpush1.bf16.msra.mxu0 0
  %593 = vmatprep.subr.bf16.mxu0 0
  %594 = vmatpush1.bf16.msra.mxu0 0
  %595 = vmatprep.subr.bf16.mxu0 0
  %596 = vmatpush1.bf16.msra.mxu0 0
  %597 = vmatprep.subr.bf16.mxu0 0
  %598 = vmatpush1.bf16.msra.mxu0 0
  %599 = vmatprep.subr.bf16.mxu0 0
  %600 = vmatpush1.bf16.msra.mxu0 0
  %601 = vmatprep.subr.bf16.mxu0 0
  %602 = vmatpush1.bf16.msra.mxu0 0
  %603 = vmatprep.mubr.bf16.mxu0 0
  %604 = vmatmul.mubr.bf16.gmra.mrb[0].mxu0 %v570
  %v605 = vpop.f32.mrb[0].mxu0
  %v606 = vadd.f32 0.0, %v605
  %v607 = vpop.f32.mrb[0].mxu0
  %v608 = vadd.f32 0.0, %v607
  %v609 = vpop.f32.mrb[0].mxu0
  %v610 = vpop.f32.mrb[0].mxu0
  %611 = vdwg.mxu0
  %612 = vmatprep.subr.bf16.mxu0 %v162
  %613 = vmatpush1.bf16.msra.mxu0 %v161
  %614 = vmatprep.subr.bf16.mxu0 %v166
  %615 = vmatpush1.bf16.msra.mxu0 %v165
  %616 = vmatprep.subr.bf16.mxu0 %v170
  %617 = vmatpush1.bf16.msra.mxu0 %v169
  %618 = vmatprep.subr.bf16.mxu0 %v174
  %619 = vmatpush1.bf16.msra.mxu0 %v173
  %620 = vmatprep.subr.bf16.mxu0 %v178
  %621 = vmatpush1.bf16.msra.mxu0 %v177
  %622 = vmatprep.subr.bf16.mxu0 %v182
  %623 = vmatpush1.bf16.msra.mxu0 %v181
  %624 = vmatprep.subr.bf16.mxu0 %v186
  %625 = vmatpush1.bf16.msra.mxu0 %v185
  %626 = vmatprep.subr.bf16.mxu0 %v190
  %627 = vmatpush1.bf16.msra.mxu0 %v189
  %628 = vmatprep.subr.bf16.mxu0 0
  %629 = vmatpush1.bf16.msra.mxu0 0
  %630 = vmatprep.subr.bf16.mxu0 0
  %631 = vmatpush1.bf16.msra.mxu0 0
  %632 = vmatprep.subr.bf16.mxu0 0
  %633 = vmatpush1.bf16.msra.mxu0 0
  %634 = vmatprep.subr.bf16.mxu0 0
  %635 = vmatpush1.bf16.msra.mxu0 0
  %636 = vmatprep.subr.bf16.mxu0 0
  %637 = vmatpush1.bf16.msra.mxu0 0
  %638 = vmatprep.subr.bf16.mxu0 0
  %639 = vmatpush1.bf16.msra.mxu0 0
  %640 = vmatprep.subr.bf16.mxu0 0
  %641 = vmatpush1.bf16.msra.mxu0 0
  %642 = vmatprep.subr.bf16.mxu0 0
  %643 = vmatpush1.bf16.msra.mxu0 0
  %644 = vmatprep.mubr.bf16.mxu0 0
  %645 = vmatmul.mubr.bf16.gmra.mrb[0].mxu0 %v570
  %v646 = vpop.f32.mrb[0].mxu0
  %v647 = vadd.f32 0.0, %v646
  %v648 = vpop.f32.mrb[0].mxu0
  %v649 = vadd.f32 0.0, %v648
  %v650 = vpop.f32.mrb[0].mxu0
  %v651 = vpop.f32.mrb[0].mxu0
  %652 = vdwg.mxu0
  %v653 = vadd.f32 %v566, %v606
  %v654 = vadd.f32 %v567, %v608
  %v655 = vadd.f32 %v568, %v647
  %v656 = vadd.f32 %v569, %v649
  %v657 = vxor.u32 %v653, 2147483648
  %v658 = vmul.f32 %v657, 1.442695
  %v659 = vpow.pop %v658
  %v660 = vadd.f32 %v659, 1.0
  %v661 = vrcp.pop %v660
  %v662 = vmul.f32 1.0, %v661
  %v663 = vxor.u32 %v654, 2147483648
  %v664 = vmul.f32 %v663, 1.442695
  %v665 = vpow.pop %v664
  %v666 = vadd.f32 %v665, 1.0
  %v667 = vrcp.pop %v666
  %v668 = vmul.f32 1.0, %v667
  %v669 = vtanh.pop %v655
  %v670 = vxor.u32 %v656, 2147483648
  %v671 = vmul.f32 %v670, 1.442695
  %v672 = vpow.pop %v671
  %v673 = vadd.f32 %v672, 1.0
  %v674 = vrcp.pop %v673
  %v675 = vmul.f32 1.0, %v674
  %v676 = vmul.f32 %v668, %v562
  %v677 = vmul.f32 %v662, %v669
  %v678 = vadd.f32 %v676, %v677
  %v679 = vtanh.pop %v678
  %v680 = vmul.f32 %v675, %v679
  %s681 = scalar_lea.vmem %s0, 128
  %v682 = vld [vmem:[%s681] sm:$0xff]
  %v683 = vld [vmem:[%s681 + $0x8] sm:$0xff]
  %v684 = vld [vmem:[%s681 + $0x10] sm:$0xff]
  %v685 = vld [vmem:[%s681 + $0x18] sm:$0xff]
  %v686 = vpack.c.bf16 %v680, %v680
  %687 = vmatprep.subr.bf16.mxu0 %v160
  %688 = vmatpush1.bf16.msra.mxu0 %v159
  %689 = vmatprep.subr.bf16.mxu0 %v164
  %690 = vmatpush1.bf16.msra.mxu0 %v163
  %691 = vmatprep.subr.bf16.mxu0 %v168
  %692 = vmatpush1.bf16.msra.mxu0 %v167
  %693 = vmatprep.subr.bf16.mxu0 %v172
  %694 = vmatpush1.bf16.msra.mxu0 %v171
  %695 = vmatprep.subr.bf16.mxu0 %v176
  %696 = vmatpush1.bf16.msra.mxu0 %v175
  %697 = vmatprep.subr.bf16.mxu0 %v180
  %698 = vmatpush1.bf16.msra.mxu0 %v179
  %699 = vmatprep.subr.bf16.mxu0 %v184
  %700 = vmatpush1.bf16.msra.mxu0 %v183
  %701 = vmatprep.subr.bf16.mxu0 %v188
  %702 = vmatpush1.bf16.msra.mxu0 %v187
  %703 = vmatprep.subr.bf16.mxu0 0
  %704 = vmatpush1.bf16.msra.mxu0 0
  %705 = vmatprep.subr.bf16.mxu0 0
  %706 = vmatpush1.bf16.msra.mxu0 0
  %707 = vmatprep.subr.bf16.mxu0 0
  %708 = vmatpush1.bf16.msra.mxu0 0
  %709 = vmatprep.subr.bf16.mxu0 0
  %710 = vmatpush1.bf16.msra.mxu0 0
  %711 = vmatprep.subr.bf16.mxu0 0
  %712 = vmatpush1.bf16.msra.mxu0 0
  %713 = vmatprep.subr.bf16.mxu0 0
  %714 = vmatpush1.bf16.msra.mxu0 0
  %715 = vmatprep.subr.bf16.mxu0 0
  %716 = vmatpush1.bf16.msra.mxu0 0
  %717 = vmatprep.subr.bf16.mxu0 0
  %718 = vmatpush1.bf16.msra.mxu0 0
  %719 = vmatprep.mubr.bf16.mxu0 0
  %720 = vmatmul.mubr.bf16.gmra.mrb[0].mxu0 %v686
  %v721 = vpop.f32.mrb[0].mxu0
  %v722 = vadd.f32 0.0, %v721
  %v723 = vpop.f32.mrb[0].mxu0
  %v724 = vadd.f32 0.0, %v723
  %v725 = vpop.f32.mrb[0].mxu0
  %v726 = vpop.f32.mrb[0].mxu0
  %727 = vdwg.mxu0
  %728 = vmatprep.subr.bf16.mxu0 %v162
  %729 = vmatpush1.bf16.msra.mxu0 %v161
  %730 = vmatprep.subr.bf16.mxu0 %v166
  %731 = vmatpush1.bf16.msra.mxu0 %v165
  %732 = vmatprep.subr.bf16.mxu0 %v170
  %733 = vmatpush1.bf16.msra.mxu0 %v169
  %734 = vmatprep.subr.bf16.mxu0 %v174
  %735 = vmatpush1.bf16.msra.mxu0 %v173
  %736 = vmatprep.subr.bf16.mxu0 %v178
  %737 = vmatpush1.bf16.msra.mxu0 %v177
  %738 = vmatprep.subr.bf16.mxu0 %v182
  %739 = vmatpush1.bf16.msra.mxu0 %v181
  %740 = vmatprep.subr.bf16.mxu0 %v186
  %741 = vmatpush1.bf16.msra.mxu0 %v185
  %742 = vmatprep.subr.bf16.mxu0 %v190
  %743 = vmatpush1.bf16.msra.mxu0 %v189
  %744 = vmatprep.subr.bf16.mxu0 0
  %745 = vmatpush1.bf16.msra.mxu0 0
  %746 = vmatprep.subr.bf16.mxu0 0
  %747 = vmatpush1.bf16.msra.mxu0 0
  %748 = vmatprep.subr.bf16.mxu0 0
  %749 = vmatpush1.bf16.msra.mxu0 0
  %750 = vmatprep.subr.bf16.mxu0 0
  %751 = vmatpush1.bf16.msra.mxu0 0
  %752 = vmatprep.subr.bf16.mxu0 0
  %753 = vmatpush1.bf16.msra.mxu0 0
  %754 = vmatprep.subr.bf16.mxu0 0
  %755 = vmatpush1.bf16.msra.mxu0 0
  %756 = vmatprep.subr.bf16.mxu0 0
  %757 = vmatpush1.bf16.msra.mxu0 0
  %758 = vmatprep.subr.bf16.mxu0 0
  %759 = vmatpush1.bf16.msra.mxu0 0
  %760 = vmatprep.mubr.bf16.mxu0 0
  %761 = vmatmul.mubr.bf16.gmra.mrb[0].mxu0 %v686
  %v762 = vpop.f32.mrb[0].mxu0
  %v763 = vadd.f32 0.0, %v762
  %v764 = vpop.f32.mrb[0].mxu0
  %v765 = vadd.f32 0.0, %v764
  %v766 = vpop.f32.mrb[0].mxu0
  %v767 = vpop.f32.mrb[0].mxu0
  %768 = vdwg.mxu0
  %v769 = vadd.f32 %v682, %v722
  %v770 = vadd.f32 %v683, %v724
  %v771 = vadd.f32 %v684, %v763
  %v772 = vadd.f32 %v685, %v765
  %v773 = vxor.u32 %v769, 2147483648
  %v774 = vmul.f32 %v773, 1.442695
  %v775 = vpow.pop %v774
  %v776 = vadd.f32 %v775, 1.0
  %v777 = vrcp.pop %v776
  %v778 = vmul.f32 1.0, %v777
  %v779 = vxor.u32 %v770, 2147483648
  %v780 = vmul.f32 %v779, 1.442695
  %v781 = vpow.pop %v780
  %v782 = vadd.f32 %v781, 1.0
  %v783 = vrcp.pop %v782
  %v784 = vmul.f32 1.0, %v783
  %v785 = vtanh.pop %v771
  %v786 = vxor.u32 %v772, 2147483648
  %v787 = vmul.f32 %v786, 1.442695
  %v788 = vpow.pop %v787
  %v789 = vadd.f32 %v788, 1.0
  %v790 = vrcp.pop %v789
  %v791 = vmul.f32 1.0, %v790
  %v792 = vmul.f32 %v784, %v678
  %v793 = vmul.f32 %v778, %v785
  %v794 = vadd.f32 %v792, %v793
  %v795 = vtanh.pop %v794
  %v796 = vmul.f32 %v791, %v795
  %s797 = scalar_lea.vmem %s0, 160
  %v798 = vld [vmem:[%s797] sm:$0xff]
  %v799 = vld [vmem:[%s797 + $0x8] sm:$0xff]
  %v800 = vld [vmem:[%s797 + $0x10] sm:$0xff]
  %v801 = vld [vmem:[%s797 + $0x18] sm:$0xff]
  %v802 = vpack.c.bf16 %v796, %v796
  %803 = vmatprep.subr.bf16.mxu0 %v160
  %804 = vmatpush1.bf16.msra.mxu0 %v159
  %805 = vmatprep.subr.bf16.mxu0 %v164
  %806 = vmatpush1.bf16.msra.mxu0 %v163
  %807 = vmatprep.subr.bf16.mxu0 %v168
  %808 = vmatpush1.bf16.msra.mxu0 %v167
  %809 = vmatprep.subr.bf16.mxu0 %v172
  %810 = vmatpush1.bf16.msra.mxu0 %v171
  %811 = vmatprep.subr.bf16.mxu0 %v176
  %812 = vmatpush1.bf16.msra.mxu0 %v175
  %813 = vmatprep.subr.bf16.mxu0 %v180
  %814 = vmatpush1.bf16.msra.mxu0 %v179
  %815 = vmatprep.subr.bf16.mxu0 %v184
  %816 = vmatpush1.bf16.msra.mxu0 %v183
  %817 = vmatprep.subr.bf16.mxu0 %v188
  %818 = vmatpush1.bf16.msra.mxu0 %v187
  %819 = vmatprep.subr.bf16.mxu0 0
  %820 = vmatpush1.bf16.msra.mxu0 0
  %821 = vmatprep.subr.bf16.mxu0 0
  %822 = vmatpush1.bf16.msra.mxu0 0
  %823 = vmatprep.subr.bf16.mxu0 0
  %824 = vmatpush1.bf16.msra.mxu0 0
  %825 = vmatprep.subr.bf16.mxu0 0
  %826 = vmatpush1.bf16.msra.mxu0 0
  %827 = vmatprep.subr.bf16.mxu0 0
  %828 = vmatpush1.bf16.msra.mxu0 0
  %829 = vmatprep.subr.bf16.mxu0 0
  %830 = vmatpush1.bf16.msra.mxu0 0
  %831 = vmatprep.subr.bf16.mxu0 0
  %832 = vmatpush1.bf16.msra.mxu0 0
  %833 = vmatprep.subr.bf16.mxu0 0
  %834 = vmatpush1.bf16.msra.mxu0 0
  %835 = vmatprep.mubr.bf16.mxu0 0
  %836 = vmatmul.mubr.bf16.gmra.mrb[0].mxu0 %v802
  %v837 = vpop.f32.mrb[0].mxu0
  %v838 = vadd.f32 0.0, %v837
  %v839 = vpop.f32.mrb[0].mxu0
  %v840 = vadd.f32 0.0, %v839
  %v841 = vpop.f32.mrb[0].mxu0
  %v842 = vpop.f32.mrb[0].mxu0
  %843 = vdwg.mxu0
  %844 = vmatprep.subr.bf16.mxu0 %v162
  %845 = vmatpush1.bf16.msra.mxu0 %v161
  %846 = vmatprep.subr.bf16.mxu0 %v166
  %847 = vmatpush1.bf16.msra.mxu0 %v165
  %848 = vmatprep.subr.bf16.mxu0 %v170
  %849 = vmatpush1.bf16.msra.mxu0 %v169
  %850 = vmatprep.subr.bf16.mxu0 %v174
  %851 = vmatpush1.bf16.msra.mxu0 %v173
  %852 = vmatprep.subr.bf16.mxu0 %v178
  %853 = vmatpush1.bf16.msra.mxu0 %v177
  %854 = vmatprep.subr.bf16.mxu0 %v182
  %855 = vmatpush1.bf16.msra.mxu0 %v181
  %856 = vmatprep.subr.bf16.mxu0 %v186
  %857 = vmatpush1.bf16.msra.mxu0 %v185
  %858 = vmatprep.subr.bf16.mxu0 %v190
  %859 = vmatpush1.bf16.msra.mxu0 %v189
  %860 = vmatprep.subr.bf16.mxu0 0
  %861 = vmatpush1.bf16.msra.mxu0 0
  %862 = vmatprep.subr.bf16.mxu0 0
  %863 = vmatpush1.bf16.msra.mxu0 0
  %864 = vmatprep.subr.bf16.mxu0 0
  %865 = vmatpush1.bf16.msra.mxu0 0
  %866 = vmatprep.subr.bf16.mxu0 0
  %867 = vmatpush1.bf16.msra.mxu0 0
  %868 = vmatprep.subr.bf16.mxu0 0
  %869 = vmatpush1.bf16.msra.mxu0 0
  %870 = vmatprep.subr.bf16.mxu0 0
  %871 = vmatpush1.bf16.msra.mxu0 0
  %872 = vmatprep.subr.bf16.mxu0 0
  %873 = vmatpush1.bf16.msra.mxu0 0
  %874 = vmatprep.subr.bf16.mxu0 0
  %875 = vmatpush1.bf16.msra.mxu0 0
  %876 = vmatprep.mubr.bf16.mxu0 0
  %877 = vmatmul.mubr.bf16.gmra.mrb[0].mxu0 %v802
  %v878 = vpop.f32.mrb[0].mxu0
  %v879 = vadd.f32 0.0, %v878
  %v880 = vpop.f32.mrb[0].mxu0
  %v881 = vadd.f32 0.0, %v880
  %v882 = vpop.f32.mrb[0].mxu0
  %v883 = vpop.f32.mrb[0].mxu0
  %884 = vdwg.mxu0
  %v885 = vadd.f32 %v798, %v838
  %v886 = vadd.f32 %v799, %v840
  %v887 = vadd.f32 %v800, %v879
  %v888 = vadd.f32 %v801, %v881
  %v889 = vxor.u32 %v885, 2147483648
  %v890 = vmul.f32 %v889, 1.442695
  %v891 = vpow.pop %v890
  %v892 = vadd.f32 %v891, 1.0
  %v893 = vrcp.pop %v892
  %v894 = vmul.f32 1.0, %v893
  %v895 = vxor.u32 %v886, 2147483648
  %v896 = vmul.f32 %v895, 1.442695
  %v897 = vpow.pop %v896
  %v898 = vadd.f32 %v897, 1.0
  %v899 = vrcp.pop %v898
  %v900 = vmul.f32 1.0, %v899
  %v901 = vtanh.pop %v887
  %v902 = vxor.u32 %v888, 2147483648
  %v903 = vmul.f32 %v902, 1.442695
  %v904 = vpow.pop %v903
  %v905 = vadd.f32 %v904, 1.0
  %v906 = vrcp.pop %v905
  %v907 = vmul.f32 1.0, %v906
  %v908 = vmul.f32 %v900, %v794
  %v909 = vmul.f32 %v894, %v901
  %v910 = vadd.f32 %v908, %v909
  %v911 = vtanh.pop %v910
  %v912 = vmul.f32 %v907, %v911
  %s913 = scalar_lea.vmem %s0, 192
  %v914 = vld [vmem:[%s913] sm:$0xff]
  %v915 = vld [vmem:[%s913 + $0x8] sm:$0xff]
  %v916 = vld [vmem:[%s913 + $0x10] sm:$0xff]
  %v917 = vld [vmem:[%s913 + $0x18] sm:$0xff]
  %v918 = vpack.c.bf16 %v912, %v912
  %919 = vmatprep.subr.bf16.mxu0 %v160
  %920 = vmatpush1.bf16.msra.mxu0 %v159
  %921 = vmatprep.subr.bf16.mxu0 %v164
  %922 = vmatpush1.bf16.msra.mxu0 %v163
  %923 = vmatprep.subr.bf16.mxu0 %v168
  %924 = vmatpush1.bf16.msra.mxu0 %v167
  %925 = vmatprep.subr.bf16.mxu0 %v172
  %926 = vmatpush1.bf16.msra.mxu0 %v171
  %927 = vmatprep.subr.bf16.mxu0 %v176
  %928 = vmatpush1.bf16.msra.mxu0 %v175
  %929 = vmatprep.subr.bf16.mxu0 %v180
  %930 = vmatpush1.bf16.msra.mxu0 %v179
  %931 = vmatprep.subr.bf16.mxu0 %v184
  %932 = vmatpush1.bf16.msra.mxu0 %v183
  %933 = vmatprep.subr.bf16.mxu0 %v188
  %934 = vmatpush1.bf16.msra.mxu0 %v187
  %935 = vmatprep.subr.bf16.mxu0 0
  %936 = vmatpush1.bf16.msra.mxu0 0
  %937 = vmatprep.subr.bf16.mxu0 0
  %938 = vmatpush1.bf16.msra.mxu0 0
  %939 = vmatprep.subr.bf16.mxu0 0
  %940 = vmatpush1.bf16.msra.mxu0 0
  %941 = vmatprep.subr.bf16.mxu0 0
  %942 = vmatpush1.bf16.msra.mxu0 0
  %943 = vmatprep.subr.bf16.mxu0 0
  %944 = vmatpush1.bf16.msra.mxu0 0
  %945 = vmatprep.subr.bf16.mxu0 0
  %946 = vmatpush1.bf16.msra.mxu0 0
  %947 = vmatprep.subr.bf16.mxu0 0
  %948 = vmatpush1.bf16.msra.mxu0 0
  %949 = vmatprep.subr.bf16.mxu0 0
  %950 = vmatpush1.bf16.msra.mxu0 0
  %951 = vmatprep.mubr.bf16.mxu0 0
  %952 = vmatmul.mubr.bf16.gmra.mrb[0].mxu0 %v918
  %v953 = vpop.f32.mrb[0].mxu0
  %v954 = vadd.f32 0.0, %v953
  %v955 = vpop.f32.mrb[0].mxu0
  %v956 = vadd.f32 0.0, %v955
  %v957 = vpop.f32.mrb[0].mxu0
  %v958 = vpop.f32.mrb[0].mxu0
  %959 = vdwg.mxu0
  %960 = vmatprep.subr.bf16.mxu0 %v162
  %961 = vmatpush1.bf16.msra.mxu0 %v161
  %962 = vmatprep.subr.bf16.mxu0 %v166
  %963 = vmatpush1.bf16.msra.mxu0 %v165
  %964 = vmatprep.subr.bf16.mxu0 %v170
  %965 = vmatpush1.bf16.msra.mxu0 %v169
  %966 = vmatprep.subr.bf16.mxu0 %v174
  %967 = vmatpush1.bf16.msra.mxu0 %v173
  %968 = vmatprep.subr.bf16.mxu0 %v178
  %969 = vmatpush1.bf16.msra.mxu0 %v177
  %970 = vmatprep.subr.bf16.mxu0 %v182
  %971 = vmatpush1.bf16.msra.mxu0 %v181
  %972 = vmatprep.subr.bf16.mxu0 %v186
  %973 = vmatpush1.bf16.msra.mxu0 %v185
  %974 = vmatprep.subr.bf16.mxu0 %v190
  %975 = vmatpush1.bf16.msra.mxu0 %v189
  %976 = vmatprep.subr.bf16.mxu0 0
  %977 = vmatpush1.bf16.msra.mxu0 0
  %978 = vmatprep.subr.bf16.mxu0 0
  %979 = vmatpush1.bf16.msra.mxu0 0
  %980 = vmatprep.subr.bf16.mxu0 0
  %981 = vmatpush1.bf16.msra.mxu0 0
  %982 = vmatprep.subr.bf16.mxu0 0
  %983 = vmatpush1.bf16.msra.mxu0 0
  %984 = vmatprep.subr.bf16.mxu0 0
  %985 = vmatpush1.bf16.msra.mxu0 0
  %986 = vmatprep.subr.bf16.mxu0 0
  %987 = vmatpush1.bf16.msra.mxu0 0
  %988 = vmatprep.subr.bf16.mxu0 0
  %989 = vmatpush1.bf16.msra.mxu0 0
  %990 = vmatprep.subr.bf16.mxu0 0
  %991 = vmatpush1.bf16.msra.mxu0 0
  %992 = vmatprep.mubr.bf16.mxu0 0
  %993 = vmatmul.mubr.bf16.gmra.mrb[0].mxu0 %v918
  %v994 = vpop.f32.mrb[0].mxu0
  %v995 = vadd.f32 0.0, %v994
  %v996 = vpop.f32.mrb[0].mxu0
  %v997 = vadd.f32 0.0, %v996
  %v998 = vpop.f32.mrb[0].mxu0
  %v999 = vpop.f32.mrb[0].mxu0
  %1000 = vdwg.mxu0
  %v1001 = vadd.f32 %v914, %v954
  %v1002 = vadd.f32 %v915, %v956
  %v1003 = vadd.f32 %v916, %v995
  %v1004 = vadd.f32 %v917, %v997
  %v1005 = vxor.u32 %v1001, 2147483648
  %v1006 = vmul.f32 %v1005, 1.442695
  %v1007 = vpow.pop %v1006
  %v1008 = vadd.f32 %v1007, 1.0
  %v1009 = vrcp.pop %v1008
  %v1010 = vmul.f32 1.0, %v1009
  %v1011 = vxor.u32 %v1002, 2147483648
  %v1012 = vmul.f32 %v1011, 1.442695
  %v1013 = vpow.pop %v1012
  %v1014 = vadd.f32 %v1013, 1.0
  %v1015 = vrcp.pop %v1014
  %v1016 = vmul.f32 1.0, %v1015
  %v1017 = vtanh.pop %v1003
  %v1018 = vxor.u32 %v1004, 2147483648
  %v1019 = vmul.f32 %v1018, 1.442695
  %v1020 = vpow.pop %v1019
  %v1021 = vadd.f32 %v1020, 1.0
  %v1022 = vrcp.pop %v1021
  %v1023 = vmul.f32 1.0, %v1022
  %v1024 = vmul.f32 %v1016, %v910
  %v1025 = vmul.f32 %v1010, %v1017
  %v1026 = vadd.f32 %v1024, %v1025
  %v1027 = vtanh.pop %v1026
  %v1028 = vmul.f32 %v1023, %v1027
  %s1029 = scalar_lea.vmem %s0, 224
  %v1030 = vld [vmem:[%s1029] sm:$0xff]
  %v1031 = vld [vmem:[%s1029 + $0x8] sm:$0xff]
  %v1032 = vld [vmem:[%s1029 + $0x10] sm:$0xff]
  %v1033 = vld [vmem:[%s1029 + $0x18] sm:$0xff]
  %v1034 = vpack.c.bf16 %v1028, %v1028
  %1035 = vmatprep.subr.bf16.mxu0 %v160
  %1036 = vmatpush1.bf16.msra.mxu0 %v159
  %1037 = vmatprep.subr.bf16.mxu0 %v164
  %1038 = vmatpush1.bf16.msra.mxu0 %v163
  %1039 = vmatprep.subr.bf16.mxu0 %v168
  %1040 = vmatpush1.bf16.msra.mxu0 %v167
  %1041 = vmatprep.subr.bf16.mxu0 %v172
  %1042 = vmatpush1.bf16.msra.mxu0 %v171
  %1043 = vmatprep.subr.bf16.mxu0 %v176
  %1044 = vmatpush1.bf16.msra.mxu0 %v175
  %1045 = vmatprep.subr.bf16.mxu0 %v180
  %1046 = vmatpush1.bf16.msra.mxu0 %v179
  %1047 = vmatprep.subr.bf16.mxu0 %v184
  %1048 = vmatpush1.bf16.msra.mxu0 %v183
  %1049 = vmatprep.subr.bf16.mxu0 %v188
  %1050 = vmatpush1.bf16.msra.mxu0 %v187
  %1051 = vmatprep.subr.bf16.mxu0 0
  %1052 = vmatpush1.bf16.msra.mxu0 0
  %1053 = vmatprep.subr.bf16.mxu0 0
  %1054 = vmatpush1.bf16.msra.mxu0 0
  %1055 = vmatprep.subr.bf16.mxu0 0
  %1056 = vmatpush1.bf16.msra.mxu0 0
  %1057 = vmatprep.subr.bf16.mxu0 0
  %1058 = vmatpush1.bf16.msra.mxu0 0
  %1059 = vmatprep.subr.bf16.mxu0 0
  %1060 = vmatpush1.bf16.msra.mxu0 0
  %1061 = vmatprep.subr.bf16.mxu0 0
  %1062 = vmatpush1.bf16.msra.mxu0 0
  %1063 = vmatprep.subr.bf16.mxu0 0
  %1064 = vmatpush1.bf16.msra.mxu0 0
  %1065 = vmatprep.subr.bf16.mxu0 0
  %1066 = vmatpush1.bf16.msra.mxu0 0
  %1067 = vmatprep.mubr.bf16.mxu0 0
  %1068 = vmatmul.mubr.bf16.gmra.mrb[0].mxu0 %v1034
  %v1069 = vpop.f32.mrb[0].mxu0
  %v1070 = vadd.f32 0.0, %v1069
  %v1071 = vpop.f32.mrb[0].mxu0
  %v1072 = vadd.f32 0.0, %v1071
  %v1073 = vpop.f32.mrb[0].mxu0
  %v1074 = vpop.f32.mrb[0].mxu0
  %1075 = vdwg.mxu0
  %1076 = vmatprep.subr.bf16.mxu0 %v162
  %1077 = vmatpush1.bf16.msra.mxu0 %v161
  %1078 = vmatprep.subr.bf16.mxu0 %v166
  %1079 = vmatpush1.bf16.msra.mxu0 %v165
  %1080 = vmatprep.subr.bf16.mxu0 %v170
  %1081 = vmatpush1.bf16.msra.mxu0 %v169
  %1082 = vmatprep.subr.bf16.mxu0 %v174
  %1083 = vmatpush1.bf16.msra.mxu0 %v173
  %1084 = vmatprep.subr.bf16.mxu0 %v178
  %1085 = vmatpush1.bf16.msra.mxu0 %v177
  %1086 = vmatprep.subr.bf16.mxu0 %v182
  %1087 = vmatpush1.bf16.msra.mxu0 %v181
  %1088 = vmatprep.subr.bf16.mxu0 %v186
  %1089 = vmatpush1.bf16.msra.mxu0 %v185
  %1090 = vmatprep.subr.bf16.mxu0 %v190
  %1091 = vmatpush1.bf16.msra.mxu0 %v189
  %1092 = vmatprep.subr.bf16.mxu0 0
  %1093 = vmatpush1.bf16.msra.mxu0 0
  %1094 = vmatprep.subr.bf16.mxu0 0
  %1095 = vmatpush1.bf16.msra.mxu0 0
  %1096 = vmatprep.subr.bf16.mxu0 0
  %1097 = vmatpush1.bf16.msra.mxu0 0
  %1098 = vmatprep.subr.bf16.mxu0 0
  %1099 = vmatpush1.bf16.msra.mxu0 0
  %1100 = vmatprep.subr.bf16.mxu0 0
  %1101 = vmatpush1.bf16.msra.mxu0 0
  %1102 = vmatprep.subr.bf16.mxu0 0
  %1103 = vmatpush1.bf16.msra.mxu0 0
  %1104 = vmatprep.subr.bf16.mxu0 0
  %1105 = vmatpush1.bf16.msra.mxu0 0
  %1106 = vmatprep.subr.bf16.mxu0 0
  %1107 = vmatpush1.bf16.msra.mxu0 0
  %1108 = vmatprep.mubr.bf16.mxu0 0
  %1109 = vmatmul.mubr.bf16.gmra.mrb[0].mxu0 %v1034
  %v1110 = vpop.f32.mrb[0].mxu0
  %v1111 = vadd.f32 0.0, %v1110
  %v1112 = vpop.f32.mrb[0].mxu0
  %v1113 = vadd.f32 0.0, %v1112
  %v1114 = vpop.f32.mrb[0].mxu0
  %v1115 = vpop.f32.mrb[0].mxu0
  %1116 = vdwg.mxu0
  %v1117 = vadd.f32 %v1030, %v1070
  %v1118 = vadd.f32 %v1031, %v1072
  %v1119 = vadd.f32 %v1032, %v1111
  %v1120 = vadd.f32 %v1033, %v1113
  %v1121 = vxor.u32 %v1117, 2147483648
  %v1122 = vmul.f32 %v1121, 1.442695
  %v1123 = vpow.pop %v1122
  %v1124 = vadd.f32 %v1123, 1.0
  %v1125 = vrcp.pop %v1124
  %v1126 = vmul.f32 1.0, %v1125
  %v1127 = vxor.u32 %v1118, 2147483648
  %v1128 = vmul.f32 %v1127, 1.442695
  %v1129 = vpow.pop %v1128
  %v1130 = vadd.f32 %v1129, 1.0
  %v1131 = vrcp.pop %v1130
  %v1132 = vmul.f32 1.0, %v1131
  %v1133 = vtanh.pop %v1119
  %v1134 = vxor.u32 %v1120, 2147483648
  %v1135 = vmul.f32 %v1134, 1.442695
  %v1136 = vpow.pop %v1135
  %v1137 = vadd.f32 %v1136, 1.0
  %v1138 = vrcp.pop %v1137
  %v1139 = vmul.f32 1.0, %v1138
  %v1140 = vmul.f32 %v1132, %v1026
  %v1141 = vmul.f32 %v1126, %v1133
  %v1142 = vadd.f32 %v1140, %v1141
  %v1143 = vtanh.pop %v1142
  %v1144 = vmul.f32 %v1139, %v1143
  %1145 = vst [vmem:[#allocation2] sm:$0xff] %v1144
  %1146 = vst [vmem:[#allocation3] sm:$0xff] %v1142
  // Predicated region
  $region22: #{text_lstm_forward.1} parent=0 // pred_check
    %p1147 = pneg %p18
  $region23: #{text_lstm_forward.1} parent=0 // pred_check_branch
    %1149 = sbr.rel (%p1147) target = $region25
  $region24: #{text_lstm_forward.1} parent=0 // pred_region
    %v1150 = vld [vmem:[%s2] sm:$0xff]
    %v1151 = vld [vmem:[%s2 + $0x8] sm:$0xff]
    %v1152 = vld [vmem:[%s2 + $0x10] sm:$0xff]
    %v1153 = vld [vmem:[%s2 + $0x18] sm:$0xff]
    %v1154 = vld [vmem:[%s2 + $0x20] sm:$0xff]
    %v1155 = vld [vmem:[%s2 + $0x28] sm:$0xff]
    %v1156 = vld [vmem:[%s2 + $0x30] sm:$0xff]
    %v1157 = vld [vmem:[%s2 + $0x38] sm:$0xff]
    %v1158 = vld [vmem:[%s2 + $0x40] sm:$0xff]
    %v1159 = vld [vmem:[%s2 + $0x48] sm:$0xff]
    %v1160 = vld [vmem:[%s2 + $0x50] sm:$0xff]
    %v1161 = vld [vmem:[%s2 + $0x58] sm:$0xff]
    %v1162 = vld [vmem:[%s2 + $0x60] sm:$0xff]
    %v1163 = vld [vmem:[%s2 + $0x68] sm:$0xff]
    %v1164 = vld [vmem:[%s2 + $0x70] sm:$0xff]
    %v1165 = vld [vmem:[%s2 + $0x78] sm:$0xff]
    %v1166 = vld [vmem:[%s3] sm:$0x1]
    %v1168 = vlaneseq
    %v1169 = vshrl.u32 %v1168, 7
    %v1170 = vsub.s32 0, %v1169
    %v1171 = vrot.slane %v1166, %v1170
    %1173 = vmatprep.subr.mxu0 0.0
    %1174 = vmatpush1.msra.mxu0 %v1150
    %1175 = vmatprep.subr.mxu0 0.0
    %1176 = vmatpush1.msra.mxu0 %v1151
    %1177 = vmatprep.subr.mxu0 0.0
    %1178 = vmatpush1.msra.mxu0 %v1152
    %1179 = vmatprep.subr.mxu0 0.0
    %1180 = vmatpush1.msra.mxu0 %v1153
    %1181 = vmatprep.subr.mxu0 0.0
    %1182 = vmatpush1.msra.mxu0 %v1154
    %1183 = vmatprep.subr.mxu0 0.0
    %1184 = vmatpush1.msra.mxu0 %v1155
    %1185 = vmatprep.subr.mxu0 0.0
    %1186 = vmatpush1.msra.mxu0 %v1156
    %1187 = vmatprep.subr.mxu0 0.0
    %1188 = vmatpush1.msra.mxu0 %v1157
    %1189 = vmatprep.subr.mxu0 0.0
    %1190 = vmatpush1.msra.mxu0 %v1158
    %1191 = vmatprep.subr.mxu0 0.0
    %1192 = vmatpush1.msra.mxu0 %v1159
    %1193 = vmatprep.subr.mxu0 0.0
    %1194 = vmatpush1.msra.mxu0 %v1160
    %1195 = vmatprep.subr.mxu0 0.0
    %1196 = vmatpush1.msra.mxu0 %v1161
    %1197 = vmatprep.subr.mxu0 0.0
    %1198 = vmatpush1.msra.mxu0 %v1162
    %1199 = vmatprep.subr.mxu0 0.0
    %1200 = vmatpush1.msra.mxu0 %v1163
    %1201 = vmatprep.subr.mxu0 0.0
    %1202 = vmatpush1.msra.mxu0 %v1164
    %1203 = vmatprep.subr.mxu0 0.0
    %1204 = vmatpush1.msra.mxu0 %v1165
    %1205 = vmatprep.subr.mxu0 0.0
    %1206 = vmatpush1.msra.mxu0 0.0
    %1207 = vmatprep.subr.mxu0 0.0
    %1208 = vmatpush1.msra.mxu0 0.0
    %1209 = vmatprep.subr.mxu0 0.0
    %1210 = vmatpush1.msra.mxu0 0.0
    %1211 = vmatprep.subr.mxu0 0.0
    %1212 = vmatpush1.msra.mxu0 0.0
    %1213 = vmatprep.subr.mxu0 0.0
    %1214 = vmatpush1.msra.mxu0 0.0
    %1215 = vmatprep.subr.mxu0 0.0
    %1216 = vmatpush1.msra.mxu0 0.0
    %1217 = vmatprep.subr.mxu0 0.0
    %1218 = vmatpush1.msra.mxu0 0.0
    %1219 = vmatprep.subr.mxu0 0.0
    %1220 = vmatpush1.msra.mxu0 0.0
    %1221 = vmatprep.subr.mxu0 0.0
    %1222 = vmatpush1.msra.mxu0 0.0
    %1223 = vmatprep.subr.mxu0 0.0
    %1224 = vmatpush1.msra.mxu0 0.0
    %1225 = vmatprep.subr.mxu0 0.0
    %1226 = vmatpush1.msra.mxu0 0.0
    %1227 = vmatprep.subr.mxu0 0.0
    %1228 = vmatpush1.msra.mxu0 0.0
    %1229 = vmatprep.subr.mxu0 0.0
    %1230 = vmatpush1.msra.mxu0 0.0
    %1231 = vmatprep.subr.mxu0 0.0
    %1232 = vmatpush1.msra.mxu0 0.0
    %1233 = vmatprep.subr.mxu0 0.0
    %1234 = vmatpush1.msra.mxu0 0.0
    %1235 = vmatprep.subr.mxu0 0.0
    %1236 = vmatpush1.msra.mxu0 0.0
    %1237 = vmatprep.mubr.f32.mxu0 0.0
    %1238 = vmatmul.mubr.f32.gmra.mrb[0].mxu0 %v1144
    %v1239 = vpop.f32.mrb[0].mxu0
    %v1240 = vadd.f32 %v1171, %v1239
    %v1241 = vpop.f32.mrb[0].mxu0
    %1242 = vdwg.mxu0
    %1243 = vmax.xlane.f32.xlu0 %v1240
    %v1244 = vpop.xlane.xlu0 %1243
    %v1245 = vsub.f32 %v1240, %v1244
    %v1246 = vmul.f32 %v1245, 1.442695
    %v1247 = vpow.pop %v1246
    %1248 = vadd.xlane.f32.xlu0 %v1247
    %v1249 = vpop.xlane.xlu0 %1248
    %v1250 = vrcp.pop %v1249
    %v1251 = vmul.f32 %v1249, %v1250
    %v1252 = vsub.f32 2.0, %v1251
    %v1253 = vmul.f32 %v1250, %v1252
    %v1254 = vmul.f32 %v1247, %v1253
    %1255 = vst [vmem:[%s4] sm:$0xff] %v1254
  $region25: #{text_lstm_forward.1} parent=0 // pred_fallthru
    _
  // Predicated region
  $region26: #{text_lstm_forward.1} parent=0 // pred_check
    _
  $region27: #{text_lstm_forward.1} parent=0 // pred_check_branch
    %1257 = sbr.rel (0) target = $region29
  $region28: #{text_lstm_forward.1} parent=0 // pred_region
    _
  $region29: #{text_lstm_forward.1} parent=0 // pred_fallthru
    _
  // Predicated region
  $region30: #{text_lstm_forward.1} parent=0 // pred_check
    _
  $region31: #{text_lstm_forward.1} parent=0 // pred_check_branch
    %1259 = sbr.rel (0) target = $region33
  $region32: #{text_lstm_forward.1} parent=0 // pred_region
    _
  $region33: #{text_lstm_forward.1} parent=0 // pred_fallthru
    _

</llo_original>
